<compile_context>
chip_gen: v5e
topology: v5e:2x2
jax: 0.10.0
libtpu: 0.0.40
codegen_flags: <defaults>
</compile_context>

<pallas_src>
import jax
import jax.numpy as jnp
from jax.experimental import pallas as pl
from jax.experimental.pallas import tpu as pltpu

BN_EPS = 1e-5
LEAKY_SLOPE = 0.01                 # PyTorch nn.LeakyReLU() default
LANE = 128                         # pad Cout to a lane-dense multiple of 128
MAX_TILE_ROWS = 1024               # default GEMM rows per tile (raise to ~2048 on v5e/v6e)
VMEM_LIMIT_BYTES = 32 * 1024 * 1024
VMEM_TILE_BUDGET = 16 * 1024 * 1024  # conservative per-tile estimate incl. double buffering


def _make_conv_stats_kernel(*, th, wo_pad, cin, cpad, fuse_taps, needs_mask):
    """3x3 stride-2 conv on one output-row tile + per-tile partial BN statistics.

    Inputs (refs): even/even body+halo, even/odd body+halo, odd/even, odd/odd phase tensors,
    weights (9*Cin, Cpad) [+ optional (TM, 1) validity mask].  Outputs: y (TM, Cpad) in the
    compute dtype and stats (8, Cpad) f32 with row0 = per-channel sum, row1 = sum of squares.
    """
    tm = th * wo_pad

    def kernel(ee_b_ref, ee_h_ref, eo_b_ref, eo_h_ref, oe_ref, oo_ref, w_ref, *rest):
        if needs_mask:
            mask_ref, y_ref, stats_ref = rest
        else:
            y_ref, stats_ref = rest

        ee = ee_b_ref[...]            # (TH, Wp+1, Cin)  even rows / even cols
        eo = eo_b_ref[...]            # (TH, Wp,   Cin)  even rows / odd  cols
        oe = oe_ref[...]              # (TH, Wp+1, Cin)  odd  rows / even cols
        oo = oo_ref[...]              # (TH, Wp,   Cin)  odd  rows / odd  cols

        # Row-shifted (kh=2) even-row phases: body rows 1..TH-1 followed by the halo row.
        if th > 1:
            ee_n = jnp.concatenate([ee[1:], ee_h_ref[...]], axis=0)
            eo_n = jnp.concatenate([eo[1:], eo_h_ref[...]], axis=0)
        else:
            ee_n = ee_h_ref[...]
            eo_n = eo_h_ref[...]

        # x_pad[2h+kh, 2w+kw] expressed through the stride-2 phase tensors; tap k = kh*3 + kw.
        taps = (
            ee[:, :wo_pad], eo, ee[:, 1:],          # kh = 0
            oe[:, :wo_pad], oo, oe[:, 1:],          # kh = 1
            ee_n[:, :wo_pad], eo_n, ee_n[:, 1:],    # kh = 2
        )

        if fuse_taps:
            # Concatenate taps along K -> one deep MXU matmul per tile.
            lhs = jnp.concatenate([t.reshape(tm, cin) for t in taps], axis=-1)
            acc = jnp.dot(lhs, w_ref[...], preferred_element_type=jnp.float32)
        else:
            acc = jnp.zeros((tm, cpad), jnp.float32)
            for k, t in enumerate(taps):
                acc = acc + jnp.dot(t.reshape(tm, cin),
                                    w_ref[k * cin:(k + 1) * cin, :],
                                    preferred_element_type=jnp.float32)

        if needs_mask:
            acc = acc * mask_ref[...]              # zero padded rows/cols (keeps stats exact)

        y_ref[...] = acc.astype(y_ref.dtype)
        s1 = jnp.sum(acc, axis=0, keepdims=True)           # (1, Cpad) per-channel sum
        s2 = jnp.sum(acc * acc, axis=0, keepdims=True)      # (1, Cpad) sum of squares
        stats_ref[...] = jnp.concatenate(
            [s1, s2, jnp.zeros((6, cpad), jnp.float32)], axis=0)

    return kernel


def _bn_act_kernel(y_ref, scale_ref, shift_ref, out_ref):
    """Tile-wise y*scale + shift (BN folded to one affine) followed by LeakyReLU."""
    v = y_ref[...].astype(jnp.float32) * scale_ref[...] + shift_ref[...]
    out_ref[...] = jnp.where(v >= 0, v, LEAKY_SLOPE * v).astype(out_ref.dtype)


def _select_row_tile(ho, wo_pad, cin, cpad, compute_bytes, fuse_taps, max_tile_rows):
    """Pick output rows per tile from a per-tile VMEM budget, then balance across tiles."""
    def tile_bytes(th):
        tm = th * wo_pad
        phase = cin * (th * (4 * wo_pad + 2) + 2 * (wo_pad + 1))     # 4 phases + halos
        weights = 9 * cin * cpad
        dma = 2 * compute_bytes * (phase + weights + tm * cpad)      # double-buffered in/out
        acc = tm * cpad * 4
        lhs = tm * (9 if fuse_taps else 1) * cin * compute_bytes * 2
        return dma + acc + lhs

    th_max = 1
    for th in range(2, ho + 1):
        if th * wo_pad > max_tile_rows or tile_bytes(th) > VMEM_TILE_BUDGET:
            break
        th_max = th
    n_t = -(-ho // th_max)            # ceil
    th = -(-ho // n_t)                # balance tiles (minimizes row padding)
    return th, n_t


def downsample_pallas(x_nchw, w, b, gamma, beta, *, compute_dtype=jnp.bfloat16,
                      max_tile_rows=MAX_TILE_ROWS, nchw_output=True):
    """x_nchw: (N, C, H, W).  w: (C, C, 3, 3).  Returns (N, C, Ho, Wo) in x's dtype."""
    del b  # exactly cancelled by the train-mode BatchNorm mean subtraction

    N, Cin, H, W = x_nchw.shape
    Cout = w.shape[0]
    Ho = (H - 1) // 2 + 1
    Wo = (W - 1) // 2 + 1
    M = N * Ho * Wo                                   # true element count per channel
    Cpad = ((Cout + LANE - 1) // LANE) * LANE
    Wo_pad = ((Wo + 7) // 8) * 8                      # sublane-aligned columns

    compute_bytes = jnp.dtype(compute_dtype).itemsize
    fuse_taps = Cin <= 128                            # K-concat only while MXU depth underfilled
    TH, n_t = _select_row_tile(Ho, Wo_pad, Cin, Cpad, compute_bytes, fuse_taps, max_tile_rows)
    Ho_pad = n_t * TH
    TM = TH * Wo_pad
    G = N * n_t                                       # independent tiles -> "parallel" grid
    needs_mask = (Ho_pad != Ho) or (Wo_pad != Wo)

    # ---- layout plumbing (pure JAX, one fused copy): NHWC, reflect pad, stride-2 phase split
    x_nhwc = jnp.transpose(x_nchw, (0, 2, 3, 1))
    x_pad = jnp.pad(x_nhwc, ((0, 0), (1, 1), (1, 1), (0, 0)), mode="reflect")

    p_ee = x_pad[:, 0:2 * Ho + 1:2, 0:2 * Wo + 1:2, :]   # (N, Ho+1, Wo+1, C)
    p_eo = x_pad[:, 0:2 * Ho + 1:2, 1:2 * Wo:2, :]       # (N, Ho+1, Wo,   C)
    p_oe = x_pad[:, 1:2 * Ho:2, 0:2 * Wo + 1:2, :]       # (N, Ho,   Wo+1, C)
    p_oo = x_pad[:, 1:2 * Ho:2, 1:2 * Wo:2, :]           # (N, Ho,   Wo,   C)

    dr = Ho_pad - Ho
    dc = Wo_pad - Wo
    p_ee = jnp.pad(p_ee, ((0, 0), (0, dr), (0, dc), (0, 0))).astype(compute_dtype)
    p_eo = jnp.pad(p_eo, ((0, 0), (0, dr), (0, dc), (0, 0))).astype(compute_dtype)
    p_oe = jnp.pad(p_oe, ((0, 0), (0, dr), (0, dc), (0, 0))).astype(compute_dtype)
    p_oo = jnp.pad(p_oo, ((0, 0), (0, dr), (0, dc), (0, 0))).astype(compute_dtype)

    # Body tiles are plain reshapes (no gather/copy); halo is one extra row per tile.
    ee_body = p_ee[:, :Ho_pad].reshape(G, TH, Wo_pad + 1, Cin)
    ee_halo = p_ee[:, TH::TH].reshape(G, 1, Wo_pad + 1, Cin)
    eo_body = p_eo[:, :Ho_pad].reshape(G, TH, Wo_pad, Cin)
    eo_halo = p_eo[:, TH::TH].reshape(G, 1, Wo_pad, Cin)
    oe_t = p_oe.reshape(G, TH, Wo_pad + 1, Cin)
    oo_t = p_oo.reshape(G, TH, Wo_pad, Cin)

    # (Cout, Cin, 3, 3) -> (kh, kw, ci, co) -> (9*Cin, Cpad); padded co columns are inert.
    w_k = jnp.transpose(w, (2, 3, 1, 0)).reshape(9, Cin, Cout)
    w_k = jnp.pad(w_k, ((0, 0), (0, 0), (0, Cpad - Cout)))
    w_k = w_k.reshape(9 * Cin, Cpad).astype(compute_dtype)

    in_specs = [
        pl.BlockSpec((None, TH, Wo_pad + 1, Cin), lambda g: (g, 0, 0, 0)),
        pl.BlockSpec((None, 1, Wo_pad + 1, Cin), lambda g: (g, 0, 0, 0)),
        pl.BlockSpec((None, TH, Wo_pad, Cin), lambda g: (g, 0, 0, 0)),
        pl.BlockSpec((None, 1, Wo_pad, Cin), lambda g: (g, 0, 0, 0)),
        pl.BlockSpec((None, TH, Wo_pad + 1, Cin), lambda g: (g, 0, 0, 0)),
        pl.BlockSpec((None, TH, Wo_pad, Cin), lambda g: (g, 0, 0, 0)),
        pl.BlockSpec((9 * Cin, Cpad), lambda g: (0, 0)),
    ]
    args = [ee_body, ee_halo, eo_body, eo_halo, oe_t, oo_t, w_k]

    if needs_mask:
        rows = jnp.arange(Ho_pad).reshape(n_t, TH, 1)
        cols = jnp.arange(Wo_pad).reshape(1, 1, Wo_pad)
        mask = ((rows < Ho) & (cols < Wo)).astype(jnp.float32).reshape(n_t, TM, 1)
        in_specs.append(pl.BlockSpec((None, TM, 1), lambda g: (g % n_t, 0, 0)))
        args.append(mask)

    conv_kernel = _make_conv_stats_kernel(th=TH, wo_pad=Wo_pad, cin=Cin, cpad=Cpad,
                                          fuse_taps=fuse_taps, needs_mask=needs_mask)

    # ---- pass 1: tiled conv (single deep MXU matmul per tile when fused) + partial BN stats
    y, stats = pl.pallas_call(
        conv_kernel,
        out_shape=(
            jax.ShapeDtypeStruct((G, TM, Cpad), compute_dtype),   # y stored in compute dtype
            jax.ShapeDtypeStruct((G, 8, Cpad), jnp.float32),
        ),
        grid_spec=pltpu.PrefetchScalarGridSpec(
            num_scalar_prefetch=0,
            grid=(G,),
            in_specs=in_specs,
            out_specs=[
                pl.BlockSpec((None, TM, Cpad), lambda g: (g, 0, 0)),
                pl.BlockSpec((None, 8, Cpad), lambda g: (g, 0, 0)),
            ],
        ),
        compiler_params=pltpu.CompilerParams(
            dimension_semantics=("parallel",),
            vmem_limit_bytes=VMEM_LIMIT_BYTES),
    )(*args)

    # ---- finalize BN (tiny per-channel math): fold into a single affine ----
    totals = jnp.sum(stats, axis=0)                        # (8, Cpad); rows 2..7 are zeros
    mean = totals[0] / M
    var = jnp.maximum(totals[1] / M - mean * mean, 0.0)    # biased variance (PyTorch train mode)
    gamma_p = jnp.pad(gamma.astype(jnp.float32), (0, Cpad - Cout))
    beta_p = jnp.pad(beta.astype(jnp.float32), (0, Cpad - Cout))
    scale = (gamma_p * jax.lax.rsqrt(var + BN_EPS)).reshape(1, Cpad)
    shift = (beta_p - mean * scale[0]).reshape(1, Cpad)

    # ---- pass 2: tiled normalize + LeakyReLU, written in place over y (aliased) ----
    out = pl.pallas_call(
        _bn_act_kernel,
        out_shape=jax.ShapeDtypeStruct((G, TM, Cpad), compute_dtype),
        grid_spec=pltpu.PrefetchScalarGridSpec(
            num_scalar_prefetch=0,
            grid=(G,),
            in_specs=[
                pl.BlockSpec((None, TM, Cpad), lambda g: (g, 0, 0)),
                pl.BlockSpec((1, Cpad), lambda g: (0, 0)),
                pl.BlockSpec((1, Cpad), lambda g: (0, 0)),
            ],
            out_specs=pl.BlockSpec((None, TM, Cpad), lambda g: (g, 0, 0)),
        ),
        input_output_aliases={0: 0},
        compiler_params=pltpu.CompilerParams(
            dimension_semantics=("parallel",),
            vmem_limit_bytes=VMEM_LIMIT_BYTES),
    )(y, scale, shift)

    # (G, TM, Cpad) -> (N, Ho, Wo, Cout); NCHW transpose only if the caller needs it.
    out = out.reshape(N, Ho_pad, Wo_pad, Cpad)[:, :Ho, :Wo, :Cout].astype(x_nchw.dtype)
    if nchw_output:
        out = jnp.transpose(out, (0, 3, 1, 2))
    return out


def downsample_reference(x_nchw, w, b, gamma, beta):
    """Pure-JAX reference (includes the conv bias, which train-mode BN provably cancels)."""
    x_pad = jnp.pad(x_nchw, ((0, 0), (0, 0), (1, 1), (1, 1)), mode="reflect")
    y = jax.lax.conv_general_dilated(
        x_pad, w, window_strides=(2, 2), padding="VALID",
        dimension_numbers=("NCHW", "OIHW", "NCHW"),
    ) + b.reshape(1, -1, 1, 1)
    mean = jnp.mean(y, axis=(0, 2, 3), keepdims=True)
    var = jnp.mean((y - mean) ** 2, axis=(0, 2, 3), keepdims=True)
    y_hat = (y - mean) / jnp.sqrt(var + BN_EPS)
    y_bn = y_hat * gamma.reshape(1, -1, 1, 1) + beta.reshape(1, -1, 1, 1)
    return jnp.where(y_bn >= 0, y_bn, LEAKY_SLOPE * y_bn)


if __name__ == "__main__":
    key = jax.random.PRNGKey(0)
    k_x, k_w, k_b, k_g, k_be, k_x2 = jax.random.split(key, 6)

    N, C, H, W = 2, 4, 16, 16
    x = jax.random.normal(k_x, (N, C, H, W), dtype=jnp.float32)

    # parameter init consistent with nn.Conv2d(C, C, 3) / nn.BatchNorm2d(C)
    fan_in = C * 3 * 3
    bound = 1.0 / (fan_in ** 0.5)
    w = jax.random.uniform(k_w, (C, C, 3, 3), jnp.float32, -bound, bound)
    b = jax.random.uniform(k_b, (C,), jnp.float32, -bound, bound)
    gamma = 1.0 + 0.1 * jax.random.normal(k_g, (C,), jnp.float32)
    beta = 0.1 * jax.random.normal(k_be, (C,), jnp.float32)

    fwd = jax.jit(downsample_pallas,
                  static_argnames=("compute_dtype", "max_tile_rows", "nchw_output"))

    ref = downsample_reference(x, w, b, gamma, beta)

    # strict check with f32 operands
    out_f32 = jax.block_until_ready(fwd(x, w, b, gamma, beta, compute_dtype=jnp.float32))
    assert out_f32.shape == (N, C, H // 2, W // 2), out_f32.shape
    assert jnp.allclose(out_f32, ref, atol=3e-4, rtol=3e-4), \
        float(jnp.max(jnp.abs(out_f32 - ref)))

    # performance configuration: bf16 operands & bf16 y intermediate, f32 accumulation/stats
    out_bf16 = jax.block_until_ready(fwd(x, w, b, gamma, beta, compute_dtype=jnp.bfloat16))
    assert out_bf16.shape == (N, C, H // 2, W // 2), out_bf16.shape
    assert jnp.allclose(out_bf16, ref, atol=1e-1, rtol=1e-1), \
        float(jnp.max(jnp.abs(out_bf16 - ref)))

    # awkward shape: exercises Wo zero-padding, non-divisor Ho row tiling, the validity mask
    # and the cross-tile halo (max_tile_rows forced small so the image splits into 2 row tiles).
    x2 = jax.random.normal(k_x2, (1, C, 13, 14), dtype=jnp.float32)
    ref2 = downsample_reference(x2, w, b, gamma, beta)
    out2 = jax.block_until_ready(
        fwd(x2, w, b, gamma, beta, compute_dtype=jnp.float32, max_tile_rows=32))
    assert out2.shape == ref2.shape, (out2.shape, ref2.shape)
    assert jnp.allclose(out2, ref2, atol=3e-4, rtol=3e-4), \
        float(jnp.max(jnp.abs(out2 - ref2)))

    print("KERNEL_OK")
</pallas_src>

<mosaic_0001>
module attributes {stable_mosaic.version = 11 : i64} {
  func.func @_bn_act_kernel(%arg0: i32, %arg1: memref<1x64x128xf32, #tpu.memory_space<vmem>>, %arg2: memref<1x128xf32, #tpu.memory_space<vmem>>, %arg3: memref<1x128xf32, #tpu.memory_space<vmem>>, %arg4: memref<1x64x128xf32, #tpu.memory_space<vmem>>) attributes {dimension_semantics = [#tpu.dimension_semantics<parallel>], iteration_bounds = array<i64: 2>, scalar_prefetch = 0 : i64, scratch_operands = 0 : i64, tpu.core_type = #tpu.core_type<tc>, window_params = [{transform_indices = @transform_0, window_bounds = array<i64: 1, 64, 128>}, {pipeline_mode = #tpu.pipeline_mode<synchronous>, transform_indices = @transform_1, window_bounds = array<i64: 1, 128>}, {pipeline_mode = #tpu.pipeline_mode<synchronous>, transform_indices = @transform_2, window_bounds = array<i64: 1, 128>}, {transform_indices = @transform_3, window_bounds = array<i64: 1, 64, 128>}]} {
    %c0 = arith.constant 0 : index
    %c0_0 = arith.constant 0 : index
    %c0_1 = arith.constant 0 : index
    %0 = vector.load %arg1[%c0, %c0_0, %c0_1] : memref<1x64x128xf32, #tpu.memory_space<vmem>>, vector<1x64x128xf32>
    %1 = vector.shape_cast %0 : vector<1x64x128xf32> to vector<64x128xf32>
    %c0_2 = arith.constant 0 : index
    %c0_3 = arith.constant 0 : index
    %2 = vector.load %arg2[%c0_2, %c0_3] : memref<1x128xf32, #tpu.memory_space<vmem>>, vector<1x128xf32>
    %3 = vector.broadcast %2 : vector<1x128xf32> to vector<64x128xf32>
    %4 = arith.mulf %1, %3 : vector<64x128xf32>
    %c0_4 = arith.constant 0 : index
    %c0_5 = arith.constant 0 : index
    %5 = vector.load %arg3[%c0_4, %c0_5] : memref<1x128xf32, #tpu.memory_space<vmem>>, vector<1x128xf32>
    %6 = vector.broadcast %5 : vector<1x128xf32> to vector<64x128xf32>
    %7 = arith.addf %4, %6 : vector<64x128xf32>
    %cst = arith.constant 0.000000e+00 : f32
    %8 = vector.broadcast %cst : f32 to vector<64x128xf32>
    %9 = arith.cmpf oge, %7, %8 : vector<64x128xf32>
    %cst_6 = arith.constant 0.00999999977 : f32
    %10 = vector.broadcast %cst_6 : f32 to vector<64x128xf32>
    %11 = arith.mulf %10, %7 : vector<64x128xf32>
    %12 = arith.select %9, %7, %11 : vector<64x128xi1>, vector<64x128xf32>
    %c0_7 = arith.constant 0 : index
    %c0_8 = arith.constant 0 : index
    %c0_9 = arith.constant 0 : index
    %13 = vector.load %arg4[%c0_7, %c0_8, %c0_9] : memref<1x64x128xf32, #tpu.memory_space<vmem>>, vector<1x64x128xf32>
    %14 = vector.shape_cast %13 : vector<1x64x128xf32> to vector<64x128xf32>
    %15 = vector.shape_cast %12 : vector<64x128xf32> to vector<1x64x128xf32>
    tpu.vector_store %arg4[%c0_7, %c0_8, %c0_9], %15 {strides = array<i32>} : memref<1x64x128xf32, #tpu.memory_space<vmem>>, vector<1x64x128xf32>,
    return
  }
  func.func @transform_0(%arg0: i32) -> (i32, i32, i32) {
    %c0_i32 = arith.constant 0 : i32
    %c0_i32_0 = arith.constant 0 : i32
    %c0_i32_1 = arith.constant 0 : i32
    return %arg0, %c0_i32, %c0_i32_0 : i32, i32, i32
  }
  func.func @transform_1(%arg0: i32) -> (i32, i32) {
    %c0_i32 = arith.constant 0 : i32
    %c0_i32_0 = arith.constant 0 : i32
    %c0_i32_1 = arith.constant 0 : i32
    return %c0_i32, %c0_i32_0 : i32, i32
  }
  func.func @transform_2(%arg0: i32) -> (i32, i32) {
    %c0_i32 = arith.constant 0 : i32
    %c0_i32_0 = arith.constant 0 : i32
    %c0_i32_1 = arith.constant 0 : i32
    return %c0_i32, %c0_i32_0 : i32, i32
  }
  func.func @transform_3(%arg0: i32) -> (i32, i32, i32) {
    %c0_i32 = arith.constant 0 : i32
    %c0_i32_0 = arith.constant 0 : i32
    %c0_i32_1 = arith.constant 0 : i32
    return %arg0, %c0_i32, %c0_i32_0 : i32, i32, i32
  }
}

module attributes {stable_mosaic.version = 11 : i64} {
  func.func @kernel(%arg0: i32, %arg1: memref<1x8x9x4xf32, #tpu.memory_space<vmem>>, %arg2: memref<1x1x9x4xf32, #tpu.memory_space<vmem>>, %arg3: memref<1x8x8x4xf32, #tpu.memory_space<vmem>>, %arg4: memref<1x1x8x4xf32, #tpu.memory_space<vmem>>, %arg5: memref<1x8x9x4xf32, #tpu.memory_space<vmem>>, %arg6: memref<1x8x8x4xf32, #tpu.memory_space<vmem>>, %arg7: memref<36x128xf32, #tpu.memory_space<vmem>>, %arg8: memref<1x64x128xf32, #tpu.memory_space<vmem>>, %arg9: memref<1x8x128xf32, #tpu.memory_space<vmem>>) attributes {dimension_semantics = [#tpu.dimension_semantics<parallel>], iteration_bounds = array<i64: 2>, scalar_prefetch = 0 : i64, scratch_operands = 0 : i64, tpu.core_type = #tpu.core_type<tc>, window_params = [{transform_indices = @transform_0, window_bounds = array<i64: 1, 8, 9, 4>}, {transform_indices = @transform_1, window_bounds = array<i64: 1, 1, 9, 4>}, {transform_indices = @transform_2, window_bounds = array<i64: 1, 8, 8, 4>}, {transform_indices = @transform_3, window_bounds = array<i64: 1, 1, 8, 4>}, {transform_indices = @transform_4, window_bounds = array<i64: 1, 8, 9, 4>}, {transform_indices = @transform_5, window_bounds = array<i64: 1, 8, 8, 4>}, {pipeline_mode = #tpu.pipeline_mode<synchronous>, transform_indices = @transform_6, window_bounds = array<i64: 36, 128>}, {transform_indices = @transform_7, window_bounds = array<i64: 1, 64, 128>}, {transform_indices = @transform_8, window_bounds = array<i64: 1, 8, 128>}]} {
    %c0 = arith.constant 0 : index
    %c0_0 = arith.constant 0 : index
    %c0_1 = arith.constant 0 : index
    %c0_2 = arith.constant 0 : index
    %0 = vector.load %arg1[%c0, %c0_0, %c0_1, %c0_2] : memref<1x8x9x4xf32, #tpu.memory_space<vmem>>, vector<1x8x9x4xf32>
    %1 = vector.shape_cast %0 : vector<1x8x9x4xf32> to vector<8x9x4xf32>
    %c0_3 = arith.constant 0 : index
    %c0_4 = arith.constant 0 : index
    %c0_5 = arith.constant 0 : index
    %c0_6 = arith.constant 0 : index
    %2 = vector.load %arg3[%c0_3, %c0_4, %c0_5, %c0_6] : memref<1x8x8x4xf32, #tpu.memory_space<vmem>>, vector<1x8x8x4xf32>
    %3 = vector.shape_cast %2 : vector<1x8x8x4xf32> to vector<8x8x4xf32>
    %c0_7 = arith.constant 0 : index
    %c0_8 = arith.constant 0 : index
    %c0_9 = arith.constant 0 : index
    %c0_10 = arith.constant 0 : index
    %4 = vector.load %arg5[%c0_7, %c0_8, %c0_9, %c0_10] : memref<1x8x9x4xf32, #tpu.memory_space<vmem>>, vector<1x8x9x4xf32>
    %5 = vector.shape_cast %4 : vector<1x8x9x4xf32> to vector<8x9x4xf32>
    %c0_11 = arith.constant 0 : index
    %c0_12 = arith.constant 0 : index
    %c0_13 = arith.constant 0 : index
    %c0_14 = arith.constant 0 : index
    %6 = vector.load %arg6[%c0_11, %c0_12, %c0_13, %c0_14] : memref<1x8x8x4xf32, #tpu.memory_space<vmem>>, vector<1x8x8x4xf32>
    %7 = vector.shape_cast %6 : vector<1x8x8x4xf32> to vector<8x8x4xf32>
    %8 = vector.extract_strided_slice %1 {offsets = [1, 0, 0], sizes = [7, 9, 4], strides = [1, 1, 1]} : vector<8x9x4xf32> to vector<7x9x4xf32>
    %c0_15 = arith.constant 0 : index
    %c0_16 = arith.constant 0 : index
    %c0_17 = arith.constant 0 : index
    %c0_18 = arith.constant 0 : index
    %9 = vector.load %arg2[%c0_15, %c0_16, %c0_17, %c0_18] : memref<1x1x9x4xf32, #tpu.memory_space<vmem>>, vector<1x1x9x4xf32>
    %10 = vector.shape_cast %9 : vector<1x1x9x4xf32> to vector<1x9x4xf32>
    %11 = tpu.concatenate %8, %10 in 0 : vector<7x9x4xf32>, vector<1x9x4xf32> -> vector<8x9x4xf32>
    %12 = vector.extract_strided_slice %3 {offsets = [1, 0, 0], sizes = [7, 8, 4], strides = [1, 1, 1]} : vector<8x8x4xf32> to vector<7x8x4xf32>
    %c0_19 = arith.constant 0 : index
    %c0_20 = arith.constant 0 : index
    %c0_21 = arith.constant 0 : index
    %c0_22 = arith.constant 0 : index
    %13 = vector.load %arg4[%c0_19, %c0_20, %c0_21, %c0_22] : memref<1x1x8x4xf32, #tpu.memory_space<vmem>>, vector<1x1x8x4xf32>
    %14 = vector.shape_cast %13 : vector<1x1x8x4xf32> to vector<1x8x4xf32>
    %15 = tpu.concatenate %12, %14 in 0 : vector<7x8x4xf32>, vector<1x8x4xf32> -> vector<8x8x4xf32>
    %16 = vector.extract_strided_slice %1 {offsets = [0, 0, 0], sizes = [8, 8, 4], strides = [1, 1, 1]} : vector<8x9x4xf32> to vector<8x8x4xf32>
    %17 = vector.extract_strided_slice %1 {offsets = [0, 1, 0], sizes = [8, 8, 4], strides = [1, 1, 1]} : vector<8x9x4xf32> to vector<8x8x4xf32>
    %18 = vector.extract_strided_slice %5 {offsets = [0, 0, 0], sizes = [8, 8, 4], strides = [1, 1, 1]} : vector<8x9x4xf32> to vector<8x8x4xf32>
    %19 = vector.extract_strided_slice %5 {offsets = [0, 1, 0], sizes = [8, 8, 4], strides = [1, 1, 1]} : vector<8x9x4xf32> to vector<8x8x4xf32>
    %20 = vector.extract_strided_slice %11 {offsets = [0, 0, 0], sizes = [8, 8, 4], strides = [1, 1, 1]} : vector<8x9x4xf32> to vector<8x8x4xf32>
    %21 = vector.extract_strided_slice %11 {offsets = [0, 1, 0], sizes = [8, 8, 4], strides = [1, 1, 1]} : vector<8x9x4xf32> to vector<8x8x4xf32>
    %22 = vector.shape_cast %16 : vector<8x8x4xf32> to vector<64x4xf32>
    %23 = vector.shape_cast %3 : vector<8x8x4xf32> to vector<64x4xf32>
    %24 = vector.shape_cast %17 : vector<8x8x4xf32> to vector<64x4xf32>
    %25 = vector.shape_cast %18 : vector<8x8x4xf32> to vector<64x4xf32>
    %26 = vector.shape_cast %7 : vector<8x8x4xf32> to vector<64x4xf32>
    %27 = vector.shape_cast %19 : vector<8x8x4xf32> to vector<64x4xf32>
    %28 = vector.shape_cast %20 : vector<8x8x4xf32> to vector<64x4xf32>
    %29 = vector.shape_cast %15 : vector<8x8x4xf32> to vector<64x4xf32>
    %30 = vector.shape_cast %21 : vector<8x8x4xf32> to vector<64x4xf32>
    %31 = tpu.concatenate %22, %23, %24, %25, %26, %27, %28, %29, %30 in 1 : vector<64x4xf32>, vector<64x4xf32>, vector<64x4xf32>, vector<64x4xf32>, vector<64x4xf32>, vector<64x4xf32>, vector<64x4xf32>, vector<64x4xf32>, vector<64x4xf32> -> vector<64x36xf32>
    %c0_23 = arith.constant 0 : index
    %c0_24 = arith.constant 0 : index
    %32 = vector.load %arg7[%c0_23, %c0_24] : memref<36x128xf32, #tpu.memory_space<vmem>>, vector<36x128xf32>
    %cst = arith.constant dense<0.000000e+00> : vector<64x128xf32>
    %33 = tpu.matmul %31, %32, %cst {dimension_numbers = #tpu.dot_dimension_numbers<[1], [0], [0], [1], [0, 0, 1, 1], [], []>} : vector<64x36xf32>, vector<36x128xf32>, vector<64x128xf32> -> vector<64x128xf32>
    %c0_25 = arith.constant 0 : index
    %c0_26 = arith.constant 0 : index
    %c0_27 = arith.constant 0 : index
    %34 = vector.load %arg8[%c0_25, %c0_26, %c0_27] : memref<1x64x128xf32, #tpu.memory_space<vmem>>, vector<1x64x128xf32>
    %35 = vector.shape_cast %34 : vector<1x64x128xf32> to vector<64x128xf32>
    %36 = vector.shape_cast %33 : vector<64x128xf32> to vector<1x64x128xf32>
    tpu.vector_store %arg8[%c0_25, %c0_26, %c0_27], %36 {strides = array<i32>} : memref<1x64x128xf32, #tpu.memory_space<vmem>>, vector<1x64x128xf32>,
    %cst_28 = arith.constant dense<0.000000e+00> : vector<128xf32>
    %37 = vector.multi_reduction <add>, %33, %cst_28 [0] : vector<64x128xf32> to vector<128xf32>
    %38 = vector.shape_cast %37 : vector<128xf32> to vector<1x128xf32>
    %39 = arith.mulf %33, %33 : vector<64x128xf32>
    %cst_29 = arith.constant dense<0.000000e+00> : vector<128xf32>
    %40 = vector.multi_reduction <add>, %39, %cst_29 [0] : vector<64x128xf32> to vector<128xf32>
    %41 = vector.shape_cast %40 : vector<128xf32> to vector<1x128xf32>
    %cst_30 = arith.constant 0.000000e+00 : f32
    %42 = vector.broadcast %cst_30 : f32 to vector<6x128xf32>
    %43 = tpu.concatenate %38, %41, %42 in 0 : vector<1x128xf32>, vector<1x128xf32>, vector<6x128xf32> -> vector<8x128xf32>
    %c0_31 = arith.constant 0 : index
    %c0_32 = arith.constant 0 : index
    %c0_33 = arith.constant 0 : index
    %44 = vector.load %arg9[%c0_31, %c0_32, %c0_33] : memref<1x8x128xf32, #tpu.memory_space<vmem>>, vector<1x8x128xf32>
    %45 = vector.shape_cast %44 : vector<1x8x128xf32> to vector<8x128xf32>
    %46 = vector.shape_cast %43 : vector<8x128xf32> to vector<1x8x128xf32>
    tpu.vector_store %arg9[%c0_31, %c0_32, %c0_33], %46 {strides = array<i32>} : memref<1x8x128xf32, #tpu.memory_space<vmem>>, vector<1x8x128xf32>,
    return
  }
  func.func @transform_0(%arg0: i32) -> (i32, i32, i32, i32) {
    %c0_i32 = arith.constant 0 : i32
    %c0_i32_0 = arith.constant 0 : i32
    %c0_i32_1 = arith.constant 0 : i32
    %c0_i32_2 = arith.constant 0 : i32
    return %arg0, %c0_i32, %c0_i32_0, %c0_i32_1 : i32, i32, i32, i32
  }
  func.func @transform_1(%arg0: i32) -> (i32, i32, i32, i32) {
    %c0_i32 = arith.constant 0 : i32
    %c0_i32_0 = arith.constant 0 : i32
    %c0_i32_1 = arith.constant 0 : i32
    %c0_i32_2 = arith.constant 0 : i32
    return %arg0, %c0_i32, %c0_i32_0, %c0_i32_1 : i32, i32, i32, i32
  }
  func.func @transform_2(%arg0: i32) -> (i32, i32, i32, i32) {
    %c0_i32 = arith.constant 0 : i32
    %c0_i32_0 = arith.constant 0 : i32
    %c0_i32_1 = arith.constant 0 : i32
    %c0_i32_2 = arith.constant 0 : i32
    return %arg0, %c0_i32, %c0_i32_0, %c0_i32_1 : i32, i32, i32, i32
  }
  func.func @transform_3(%arg0: i32) -> (i32, i32, i32, i32) {
    %c0_i32 = arith.constant 0 : i32
    %c0_i32_0 = arith.constant 0 : i32
    %c0_i32_1 = arith.constant 0 : i32
    %c0_i32_2 = arith.constant 0 : i32
    return %arg0, %c0_i32, %c0_i32_0, %c0_i32_1 : i32, i32, i32, i32
  }
  func.func @transform_4(%arg0: i32) -> (i32, i32, i32, i32) {
    %c0_i32 = arith.constant 0 : i32
    %c0_i32_0 = arith.constant 0 : i32
    %c0_i32_1 = arith.constant 0 : i32
    %c0_i32_2 = arith.constant 0 : i32
    return %arg0, %c0_i32, %c0_i32_0, %c0_i32_1 : i32, i32, i32, i32
  }
  func.func @transform_5(%arg0: i32) -> (i32, i32, i32, i32) {
    %c0_i32 = arith.constant 0 : i32
    %c0_i32_0 = arith.constant 0 : i32
    %c0_i32_1 = arith.constant 0 : i32
    %c0_i32_2 = arith.constant 0 : i32
    return %arg0, %c0_i32, %c0_i32_0, %c0_i32_1 : i32, i32, i32, i32
  }
  func.func @transform_6(%arg0: i32) -> (i32, i32) {
    %c0_i32 = arith.constant 0 : i32
    %c0_i32_0 = arith.constant 0 : i32
    %c0_i32_1 = arith.constant 0 : i32
    return %c0_i32, %c0_i32_0 : i32, i32
  }
  func.func @transform_7(%arg0: i32) -> (i32, i32, i32) {
    %c0_i32 = arith.constant 0 : i32
    %c0_i32_0 = arith.constant 0 : i32
    %c0_i32_1 = arith.constant 0 : i32
    return %arg0, %c0_i32, %c0_i32_0 : i32, i32, i32
  }
  func.func @transform_8(%arg0: i32) -> (i32, i32, i32) {
    %c0_i32 = arith.constant 0 : i32
    %c0_i32_0 = arith.constant 0 : i32
    %c0_i32_1 = arith.constant 0 : i32
    return %arg0, %c0_i32, %c0_i32_0 : i32, i32, i32
  }
}

</mosaic_0001>

<llo_original>
// kernel: downsample_pallas.3
$region0: #{downsample_pallas.3}
  #allocation0 [shape = 'u32[]', space=smem, size = 0x4, offset = 0x4, fixed_abs, tag = 'smem constant byte address 0x4 - core index']
  #allocation1 [shape = 'u32[72,128]{1,0:T(1,128)}', space=vmem, size = 0x9000, scoped, tag = 'internal scratch']
  %s0 = inlined_call_operand.vmem [shape: f32[2,64,128], index: 0, kind: input, shape index: {}, may-alias: {0,3}]
  %s1 = inlined_call_operand.vmem [shape: f32[1,128], index: 1, kind: input, shape index: {}]
  %s2 = inlined_call_operand.vmem [shape: f32[1,128], index: 2, kind: input, shape index: {}]
  %s3 = inlined_call_operand.vmem [shape: f32[2,64,128], index: 3, kind: output, shape index: {}, may-alias: {0,3}]
  %s4 = sld [smem:[#allocation0]]
  $region45: #{downsample_pallas.3} parent=0
    _
  %s6 = ssub.s32 1, %s4
  %s7 = scalar_select 0, %s6, %s4
  loop: start=0, step=1, limit=4
  $region2: #{downsample_pallas.3} parent=0 // loop_pre_header
    _
  $region3: #{downsample_pallas.3} parent=0 // loop_header
    %s9 = sphi 0, %s13
    %p10 = scmp.ge.s32.totalorder %s9, 4
    %s19 = sphi 0, %s21
    %s22 = sphi 0, %s19
    %s23 = sphi 0, %s22
    %s39 = sphi 0, %s23
    %s43 = sphi 0, %s43
    %s45 = sphi 0, %s43
    %s46 = sphi 0, %s45
    %s60 = sphi 0, %s46
    %s64 = sphi 0, %s64
    %s66 = sphi 0, %s64
    %s67 = sphi 0, %s66
    %s81 = sphi 0, %s67
    %s87 = sphi 0, %s89
    %s90 = sphi 0, %s87
    %s91 = sphi 0, %s90
    %s107 = sphi 0, %s91
  $region4: #{downsample_pallas.3} parent=0 // loop_header_branch
    %12 = sbr.rel (%p10) target = $region8
  $region5: #{downsample_pallas.3} parent=0 // loop_body
    %s14 = ssub.s32 %s9, 1
    %s15 = ssub.s32 %s9, 2
    %s16 = sadd.s32 %s9, 1
    %s17 = ssub.s32 %s9, %s16
    %p18 = scmp.eq.s32.totalorder %s17, 0
    %s20 = sadd.s32 %s19, 1
    %s21 = scalar_select %p18, %s19, %s20
    %p24 = pneg %p18
    %p25 = scmp.eq.s32.totalorder %s9, 1
    %p26 = por %p24, %p25
    %p27 = scmp.ne.s32.totalorder %s19, %s22
    %p28 = scmp.eq.s32.totalorder %s9, 0
    %p29 = por %p27, %p28
    %p30 = scmp.ne.s32.totalorder %s19, %s22
    %p31 = scmp.eq.s32.totalorder %s14, 1
    %p32 = por %p30, %p31
    %p33 = scmp.ne.s32.totalorder %s22, %s23
    %p34 = scmp.eq.s32.totalorder %s14, 0
    %p35 = por %p33, %p34
    %p36 = scmp.ne.s32.totalorder %s22, %s23
    %p37 = scmp.eq.s32.totalorder %s15, 1
    %p38 = por %p36, %p37
    %p40 = scmp.ne.s32.totalorder %s23, %s39
    %p41 = scmp.eq.s32.totalorder %s15, 0
    %p42 = por %p40, %p41
    %s44 = sadd.s32 %s43, 1
    %p47 = scmp.eq.s32.totalorder %s9, 1
    %p48 = scmp.ne.s32.totalorder %s43, %s45
    %p49 = scmp.eq.s32.totalorder %s9, 0
    %p50 = por %p48, %p49
    %p51 = scmp.ne.s32.totalorder %s43, %s45
    %p52 = scmp.eq.s32.totalorder %s14, 1
    %p53 = por %p51, %p52
    %p54 = scmp.ne.s32.totalorder %s45, %s46
    %p55 = scmp.eq.s32.totalorder %s14, 0
    %p56 = por %p54, %p55
    %p57 = scmp.ne.s32.totalorder %s45, %s46
    %p58 = scmp.eq.s32.totalorder %s15, 1
    %p59 = por %p57, %p58
    %p61 = scmp.ne.s32.totalorder %s46, %s60
    %p62 = scmp.eq.s32.totalorder %s15, 0
    %p63 = por %p61, %p62
    %s65 = sadd.s32 %s64, 1
    %p68 = scmp.eq.s32.totalorder %s9, 1
    %p69 = scmp.ne.s32.totalorder %s64, %s66
    %p70 = scmp.eq.s32.totalorder %s9, 0
    %p71 = por %p69, %p70
    %p72 = scmp.ne.s32.totalorder %s64, %s66
    %p73 = scmp.eq.s32.totalorder %s14, 1
    %p74 = por %p72, %p73
    %p75 = scmp.ne.s32.totalorder %s66, %s67
    %p76 = scmp.eq.s32.totalorder %s14, 0
    %p77 = por %p75, %p76
    %p78 = scmp.ne.s32.totalorder %s66, %s67
    %p79 = scmp.eq.s32.totalorder %s15, 1
    %p80 = por %p78, %p79
    %p82 = scmp.ne.s32.totalorder %s67, %s81
    %p83 = scmp.eq.s32.totalorder %s15, 0
    %p84 = por %p82, %p83
    %s85 = ssub.s32 %s9, %s16
    %p86 = scmp.eq.s32.totalorder %s85, 0
    %s88 = sadd.s32 %s87, 1
    %s89 = scalar_select %p86, %s87, %s88
    %p92 = pneg %p86
    %p93 = scmp.eq.s32.totalorder %s9, 1
    %p94 = por %p92, %p93
    %p95 = scmp.ne.s32.totalorder %s87, %s90
    %p96 = scmp.eq.s32.totalorder %s9, 0
    %p97 = por %p95, %p96
    %p98 = scmp.ne.s32.totalorder %s87, %s90
    %p99 = scmp.eq.s32.totalorder %s14, 1
    %p100 = por %p98, %p99
    %p101 = scmp.ne.s32.totalorder %s90, %s91
    %p102 = scmp.eq.s32.totalorder %s14, 0
    %p103 = por %p101, %p102
    %p104 = scmp.ne.s32.totalorder %s90, %s91
    %p105 = scmp.eq.s32.totalorder %s15, 1
    %p106 = por %p104, %p105
    %p108 = scmp.ne.s32.totalorder %s91, %s107
    %p109 = scmp.eq.s32.totalorder %s15, 0
    %p110 = por %p108, %p109
    %p111 = scmp.le.s32.totalorder 1, %s9
    %p112 = scmp.lt.s32.totalorder %s9, 3
    %p113 = pnand %p111, %p112
    %p114 = pneg %p113
    // Predicated region
    $region9: #{downsample_pallas.3} parent=5 // pred_check
      _
    $region10: #{downsample_pallas.3} parent=5 // pred_check_branch
      %116 = sbr.rel (%p113) target = $region12
    $region11: #{downsample_pallas.3} parent=5 // pred_region
      %s117 = ssub.s32 %s9, 1
      // Predicated region
      $region13: #{downsample_pallas.3} parent=11 // pred_check
        %p118 = pneg %p56
      $region14: #{downsample_pallas.3} parent=11 // pred_check_branch
        %120 = sbr.rel (%p118) target = $region16
      $region15: #{downsample_pallas.3} parent=11 // pred_region
        _
      $region16: #{downsample_pallas.3} parent=11 // pred_fallthru
        _
      // Predicated region
      $region17: #{downsample_pallas.3} parent=11 // pred_check
        %p121 = pneg %p77
      $region18: #{downsample_pallas.3} parent=11 // pred_check_branch
        %123 = sbr.rel (%p121) target = $region20
      $region19: #{downsample_pallas.3} parent=11 // pred_region
        _
      $region20: #{downsample_pallas.3} parent=11 // pred_fallthru
        _
    $region12: #{downsample_pallas.3} parent=5 // pred_fallthru
      _
    %p124 = scmp.lt.s32.totalorder %s9, 2
    // Predicated region
    $region21: #{downsample_pallas.3} parent=5 // pred_check
      %p125 = pneg %p124
    $region22: #{downsample_pallas.3} parent=5 // pred_check_branch
      %127 = sbr.rel (%p125) target = $region24
    $region23: #{downsample_pallas.3} parent=5 // pred_region
      // Predicated region
      $region25: #{downsample_pallas.3} parent=23 // pred_check
        %p128 = pneg %p29
      $region26: #{downsample_pallas.3} parent=23 // pred_check_branch
        %130 = sbr.rel (%p128) target = $region28
      $region27: #{downsample_pallas.3} parent=23 // pred_region
        %p131 = scmp.lt.s32.totalorder %s9, 1
        %s132 = scalar_select %p131, %s9, 1
        %s133 = smul.addr %s132, 8
        %s134 = smul.addr %s133, 8
        %s135 = scalar_lea.vmem %s0, %s134
      $region28: #{downsample_pallas.3} parent=23 // pred_fallthru
        _
    $region24: #{downsample_pallas.3} parent=5 // pred_fallthru
      _
    %p136 = scmp.le.s32.totalorder 1, %s9
    %p137 = scmp.lt.s32.totalorder %s9, 3
    %p138 = pnand %p136, %p137
    %p139 = pneg %p138
    // Predicated region
    $region29: #{downsample_pallas.3} parent=5 // pred_check
      _
    $region30: #{downsample_pallas.3} parent=5 // pred_check_branch
      %141 = sbr.rel (%p138) target = $region32
    $region31: #{downsample_pallas.3} parent=5 // pred_region
      %s142 = ssub.s32 %s9, 1
      %p143 = scmp.lt.s32.totalorder %s14, 1
      %s144 = scalar_select %p143, %s14, 1
      %s145 = smul.addr %s144, 8
      %s146 = smul.addr %s145, 8
      %s147 = scalar_lea.vmem %s0, %s146
      %p148 = pneg %p35
      %p149 = pneg %p32
      %p150 = pneg %p56
      %p151 = pneg %p53
      %p152 = pneg %p77
      %p153 = pneg %p74
      %p154 = pneg %p103
      %p155 = pneg %p100
      %p156 = scmp.lt.s32.totalorder %s14, 1
      %s157 = scalar_select %p156, %s14, 1
      %s158 = smul.addr %s157, 8
      %s159 = smul.addr %s158, 8
      %s160 = scalar_lea.vmem %s3, %s159
      %p161 = scmp.lt.s32.totalorder %s14, 1
      %s162 = scalar_select %p161, %s14, 1
      %s163 = smul.addr %s162, 8
      %s164 = smul.addr %s163, 8
      %s165 = scalar_lea.vmem %s0, %s164
      %p166 = scmp.lt.s32.totalorder %s14, 1
      %s167 = scalar_select %p166, %s14, 1
      %s168 = smul.addr %s167, 8
      %s169 = smul.addr %s168, 8
      %s170 = scalar_lea.vmem %s3, %s169
      %v171 = vld [vmem:[%s165] sm:$0xff]
      %v172 = vld [vmem:[%s165 + $0x8] sm:$0xff]
      %v173 = vld [vmem:[%s165 + $0x10] sm:$0xff]
      %v174 = vld [vmem:[%s165 + $0x18] sm:$0xff]
      %v175 = vld [vmem:[%s165 + $0x20] sm:$0xff]
      %v176 = vld [vmem:[%s165 + $0x28] sm:$0xff]
      %v177 = vld [vmem:[%s165 + $0x30] sm:$0xff]
      %v178 = vld [vmem:[%s165 + $0x38] sm:$0xff]
      %v179 = vld [vmem:[%s1] sm:$0x1]
      %v181 = vperm.slane %v179, 0
      %v183 = vmul.f32 %v171, %v181
      %v184 = vmul.f32 %v172, %v181
      %v185 = vmul.f32 %v173, %v181
      %v186 = vmul.f32 %v174, %v181
      %v187 = vmul.f32 %v175, %v181
      %v188 = vmul.f32 %v176, %v181
      %v189 = vmul.f32 %v177, %v181
      %v190 = vmul.f32 %v178, %v181
      %v191 = vld [vmem:[%s2] sm:$0x1]
      %v193 = vperm.slane %v191, 0
      %v195 = vadd.f32 %v183, %v193
      %v196 = vadd.f32 %v184, %v193
      %v197 = vadd.f32 %v185, %v193
      %v198 = vadd.f32 %v186, %v193
      %v199 = vadd.f32 %v187, %v193
      %v200 = vadd.f32 %v188, %v193
      %v201 = vadd.f32 %v189, %v193
      %v202 = vadd.f32 %v190, %v193
      %vm203 = vcmp.ge.f32.partialorder %v195, 0.0
      %vm204 = vcmp.ge.f32.partialorder %v196, 0.0
      %vm205 = vcmp.ge.f32.partialorder %v197, 0.0
      %vm206 = vcmp.ge.f32.partialorder %v198, 0.0
      %vm207 = vcmp.ge.f32.partialorder %v199, 0.0
      %vm208 = vcmp.ge.f32.partialorder %v200, 0.0
      %vm209 = vcmp.ge.f32.partialorder %v201, 0.0
      %vm210 = vcmp.ge.f32.partialorder %v202, 0.0
      %v211 = vmul.f32 %v195, 0.01
      %v212 = vmul.f32 %v196, 0.01
      %v213 = vmul.f32 %v197, 0.01
      %v214 = vmul.f32 %v198, 0.01
      %v215 = vmul.f32 %v199, 0.01
      %v216 = vmul.f32 %v200, 0.01
      %v217 = vmul.f32 %v201, 0.01
      %v218 = vmul.f32 %v202, 0.01
      %v219 = vsel %vm203, %v195, %v211
      %v220 = vsel %vm204, %v196, %v212
      %v221 = vsel %vm205, %v197, %v213
      %v222 = vsel %vm206, %v198, %v214
      %v223 = vsel %vm207, %v199, %v215
      %v224 = vsel %vm208, %v200, %v216
      %v225 = vsel %vm209, %v201, %v217
      %v226 = vsel %vm210, %v202, %v218
      %227 = vst [vmem:[%s170] sm:$0xff] %v219
      %228 = vst [vmem:[%s170 + $0x8] sm:$0xff] %v220
      %229 = vst [vmem:[%s170 + $0x10] sm:$0xff] %v221
      %230 = vst [vmem:[%s170 + $0x18] sm:$0xff] %v222
      %231 = vst [vmem:[%s170 + $0x20] sm:$0xff] %v223
      %232 = vst [vmem:[%s170 + $0x28] sm:$0xff] %v224
      %233 = vst [vmem:[%s170 + $0x30] sm:$0xff] %v225
      %234 = vst [vmem:[%s170 + $0x38] sm:$0xff] %v226
      %p235 = scmp.lt.s32.totalorder %s14, 1
      %s236 = scalar_select %p235, %s14, 1
      %s237 = smul.addr %s236, 8
      %s238 = smul.addr %s237, 8
      %s239 = scalar_lea.vmem %s3, %s238
      // Predicated region
      $region33: #{downsample_pallas.3} parent=31 // pred_check
        %p240 = pneg %p100
      $region34: #{downsample_pallas.3} parent=31 // pred_check_branch
        %242 = sbr.rel (%p240) target = $region36
      $region35: #{downsample_pallas.3} parent=31 // pred_region
        _
      $region36: #{downsample_pallas.3} parent=31 // pred_fallthru
        _
    $region32: #{downsample_pallas.3} parent=5 // pred_fallthru
      _
    %p243 = scmp.le.s32.totalorder 2, %s9
    // Predicated region
    $region37: #{downsample_pallas.3} parent=5 // pred_check
      %p244 = pneg %p243
    $region38: #{downsample_pallas.3} parent=5 // pred_check_branch
      %246 = sbr.rel (%p244) target = $region40
    $region39: #{downsample_pallas.3} parent=5 // pred_region
      %s247 = ssub.s32 %s9, 2
      // Predicated region
      $region41: #{downsample_pallas.3} parent=39 // pred_check
        %p248 = pneg %p106
      $region42: #{downsample_pallas.3} parent=39 // pred_check_branch
        %250 = sbr.rel (%p248) target = $region44
      $region43: #{downsample_pallas.3} parent=39 // pred_region
        %p251 = scmp.lt.s32.totalorder %s15, 1
        %s252 = scalar_select %p251, %s15, 1
        %s253 = smul.addr %s252, 8
        %s254 = smul.addr %s253, 8
        %s255 = scalar_lea.vmem %s3, %s254
      $region44: #{downsample_pallas.3} parent=39 // pred_fallthru
        _
    $region40: #{downsample_pallas.3} parent=5 // pred_fallthru
      _
  $region6: #{downsample_pallas.3} parent=0 // loop_footer
    %s13 = sadd.s32 1, %s9
  $region7: #{downsample_pallas.3} parent=0 // loop_footer_branch
    %8 = sbr.rel target = $region3
  $region8: #{downsample_pallas.3} parent=0 // loop_exit
    _

// kernel: downsample_pallas.2
$region0: #{downsample_pallas.2}
  #allocation0 [shape = 'u32[]', space=smem, size = 0x4, offset = 0x4, fixed_abs, tag = 'smem constant byte address 0x4 - core index']
  #allocation1 [shape = 'u32[72,128]{1,0:T(1,128)}', space=vmem, size = 0x9000, scoped, tag = 'internal scratch']
  %s0 = inlined_call_operand.vmem [shape: f32[2,8,9,4], index: 0, kind: input, shape index: {}]
  %s1 = inlined_call_operand.vmem [shape: f32[2,1,9,4], index: 1, kind: input, shape index: {}]
  %s2 = inlined_call_operand.vmem [shape: f32[2,8,8,4], index: 2, kind: input, shape index: {}]
  %s3 = inlined_call_operand.vmem [shape: f32[2,1,8,4], index: 3, kind: input, shape index: {}]
  %s4 = inlined_call_operand.vmem [shape: f32[2,8,9,4], index: 4, kind: input, shape index: {}]
  %s5 = inlined_call_operand.vmem [shape: f32[2,8,8,4], index: 5, kind: input, shape index: {}]
  %s6 = inlined_call_operand.vmem [shape: f32[36,128], index: 6, kind: input, shape index: {}]
  %s7 = inlined_call_operand.vmem [shape: f32[2,64,128], index: 7, kind: output, shape index: {0}]
  %s8 = inlined_call_operand.vmem [shape: f32[2,8,128], index: 8, kind: output, shape index: {1}]
  %9 = xla_tuple %s7, %s8
  %s10 = sld [smem:[#allocation0]]
  $region69: #{downsample_pallas.2} parent=0
    _
  %s12 = ssub.s32 1, %s10
  %s13 = scalar_select 0, %s12, %s10
  loop: start=0, step=1, limit=4
  $region2: #{downsample_pallas.2} parent=0 // loop_pre_header
    _
  $region3: #{downsample_pallas.2} parent=0 // loop_header
    %s15 = sphi 0, %s19
    %p16 = scmp.ge.s32.totalorder %s15, 4
    %s25 = sphi 0, %s27
    %s28 = sphi 0, %s25
    %s29 = sphi 0, %s28
    %s45 = sphi 0, %s29
    %s51 = sphi 0, %s53
    %s54 = sphi 0, %s51
    %s55 = sphi 0, %s54
    %s71 = sphi 0, %s55
    %s77 = sphi 0, %s79
    %s80 = sphi 0, %s77
    %s81 = sphi 0, %s80
    %s97 = sphi 0, %s81
    %s103 = sphi 0, %s105
    %s106 = sphi 0, %s103
    %s107 = sphi 0, %s106
    %s123 = sphi 0, %s107
    %s129 = sphi 0, %s131
    %s132 = sphi 0, %s129
    %s133 = sphi 0, %s132
    %s149 = sphi 0, %s133
    %s155 = sphi 0, %s157
    %s158 = sphi 0, %s155
    %s159 = sphi 0, %s158
    %s175 = sphi 0, %s159
    %s179 = sphi 0, %s179
    %s181 = sphi 0, %s179
    %s182 = sphi 0, %s181
    %s196 = sphi 0, %s182
    %s202 = sphi 0, %s204
    %s205 = sphi 0, %s202
    %s206 = sphi 0, %s205
    %s222 = sphi 0, %s206
    %s228 = sphi 0, %s230
    %s231 = sphi 0, %s228
    %s232 = sphi 0, %s231
    %s248 = sphi 0, %s232
  $region4: #{downsample_pallas.2} parent=0 // loop_header_branch
    %18 = sbr.rel (%p16) target = $region8
  $region5: #{downsample_pallas.2} parent=0 // loop_body
    %s20 = ssub.s32 %s15, 1
    %s21 = ssub.s32 %s15, 2
    %s22 = sadd.s32 %s15, 1
    %s23 = ssub.s32 %s15, %s22
    %p24 = scmp.eq.s32.totalorder %s23, 0
    %s26 = sadd.s32 %s25, 1
    %s27 = scalar_select %p24, %s25, %s26
    %p30 = pneg %p24
    %p31 = scmp.eq.s32.totalorder %s15, 1
    %p32 = por %p30, %p31
    %p33 = scmp.ne.s32.totalorder %s25, %s28
    %p34 = scmp.eq.s32.totalorder %s15, 0
    %p35 = por %p33, %p34
    %p36 = scmp.ne.s32.totalorder %s25, %s28
    %p37 = scmp.eq.s32.totalorder %s20, 1
    %p38 = por %p36, %p37
    %p39 = scmp.ne.s32.totalorder %s28, %s29
    %p40 = scmp.eq.s32.totalorder %s20, 0
    %p41 = por %p39, %p40
    %p42 = scmp.ne.s32.totalorder %s28, %s29
    %p43 = scmp.eq.s32.totalorder %s21, 1
    %p44 = por %p42, %p43
    %p46 = scmp.ne.s32.totalorder %s29, %s45
    %p47 = scmp.eq.s32.totalorder %s21, 0
    %p48 = por %p46, %p47
    %s49 = ssub.s32 %s15, %s22
    %p50 = scmp.eq.s32.totalorder %s49, 0
    %s52 = sadd.s32 %s51, 1
    %s53 = scalar_select %p50, %s51, %s52
    %p56 = pneg %p50
    %p57 = scmp.eq.s32.totalorder %s15, 1
    %p58 = por %p56, %p57
    %p59 = scmp.ne.s32.totalorder %s51, %s54
    %p60 = scmp.eq.s32.totalorder %s15, 0
    %p61 = por %p59, %p60
    %p62 = scmp.ne.s32.totalorder %s51, %s54
    %p63 = scmp.eq.s32.totalorder %s20, 1
    %p64 = por %p62, %p63
    %p65 = scmp.ne.s32.totalorder %s54, %s55
    %p66 = scmp.eq.s32.totalorder %s20, 0
    %p67 = por %p65, %p66
    %p68 = scmp.ne.s32.totalorder %s54, %s55
    %p69 = scmp.eq.s32.totalorder %s21, 1
    %p70 = por %p68, %p69
    %p72 = scmp.ne.s32.totalorder %s55, %s71
    %p73 = scmp.eq.s32.totalorder %s21, 0
    %p74 = por %p72, %p73
    %s75 = ssub.s32 %s15, %s22
    %p76 = scmp.eq.s32.totalorder %s75, 0
    %s78 = sadd.s32 %s77, 1
    %s79 = scalar_select %p76, %s77, %s78
    %p82 = pneg %p76
    %p83 = scmp.eq.s32.totalorder %s15, 1
    %p84 = por %p82, %p83
    %p85 = scmp.ne.s32.totalorder %s77, %s80
    %p86 = scmp.eq.s32.totalorder %s15, 0
    %p87 = por %p85, %p86
    %p88 = scmp.ne.s32.totalorder %s77, %s80
    %p89 = scmp.eq.s32.totalorder %s20, 1
    %p90 = por %p88, %p89
    %p91 = scmp.ne.s32.totalorder %s80, %s81
    %p92 = scmp.eq.s32.totalorder %s20, 0
    %p93 = por %p91, %p92
    %p94 = scmp.ne.s32.totalorder %s80, %s81
    %p95 = scmp.eq.s32.totalorder %s21, 1
    %p96 = por %p94, %p95
    %p98 = scmp.ne.s32.totalorder %s81, %s97
    %p99 = scmp.eq.s32.totalorder %s21, 0
    %p100 = por %p98, %p99
    %s101 = ssub.s32 %s15, %s22
    %p102 = scmp.eq.s32.totalorder %s101, 0
    %s104 = sadd.s32 %s103, 1
    %s105 = scalar_select %p102, %s103, %s104
    %p108 = pneg %p102
    %p109 = scmp.eq.s32.totalorder %s15, 1
    %p110 = por %p108, %p109
    %p111 = scmp.ne.s32.totalorder %s103, %s106
    %p112 = scmp.eq.s32.totalorder %s15, 0
    %p113 = por %p111, %p112
    %p114 = scmp.ne.s32.totalorder %s103, %s106
    %p115 = scmp.eq.s32.totalorder %s20, 1
    %p116 = por %p114, %p115
    %p117 = scmp.ne.s32.totalorder %s106, %s107
    %p118 = scmp.eq.s32.totalorder %s20, 0
    %p119 = por %p117, %p118
    %p120 = scmp.ne.s32.totalorder %s106, %s107
    %p121 = scmp.eq.s32.totalorder %s21, 1
    %p122 = por %p120, %p121
    %p124 = scmp.ne.s32.totalorder %s107, %s123
    %p125 = scmp.eq.s32.totalorder %s21, 0
    %p126 = por %p124, %p125
    %s127 = ssub.s32 %s15, %s22
    %p128 = scmp.eq.s32.totalorder %s127, 0
    %s130 = sadd.s32 %s129, 1
    %s131 = scalar_select %p128, %s129, %s130
    %p134 = pneg %p128
    %p135 = scmp.eq.s32.totalorder %s15, 1
    %p136 = por %p134, %p135
    %p137 = scmp.ne.s32.totalorder %s129, %s132
    %p138 = scmp.eq.s32.totalorder %s15, 0
    %p139 = por %p137, %p138
    %p140 = scmp.ne.s32.totalorder %s129, %s132
    %p141 = scmp.eq.s32.totalorder %s20, 1
    %p142 = por %p140, %p141
    %p143 = scmp.ne.s32.totalorder %s132, %s133
    %p144 = scmp.eq.s32.totalorder %s20, 0
    %p145 = por %p143, %p144
    %p146 = scmp.ne.s32.totalorder %s132, %s133
    %p147 = scmp.eq.s32.totalorder %s21, 1
    %p148 = por %p146, %p147
    %p150 = scmp.ne.s32.totalorder %s133, %s149
    %p151 = scmp.eq.s32.totalorder %s21, 0
    %p152 = por %p150, %p151
    %s153 = ssub.s32 %s15, %s22
    %p154 = scmp.eq.s32.totalorder %s153, 0
    %s156 = sadd.s32 %s155, 1
    %s157 = scalar_select %p154, %s155, %s156
    %p160 = pneg %p154
    %p161 = scmp.eq.s32.totalorder %s15, 1
    %p162 = por %p160, %p161
    %p163 = scmp.ne.s32.totalorder %s155, %s158
    %p164 = scmp.eq.s32.totalorder %s15, 0
    %p165 = por %p163, %p164
    %p166 = scmp.ne.s32.totalorder %s155, %s158
    %p167 = scmp.eq.s32.totalorder %s20, 1
    %p168 = por %p166, %p167
    %p169 = scmp.ne.s32.totalorder %s158, %s159
    %p170 = scmp.eq.s32.totalorder %s20, 0
    %p171 = por %p169, %p170
    %p172 = scmp.ne.s32.totalorder %s158, %s159
    %p173 = scmp.eq.s32.totalorder %s21, 1
    %p174 = por %p172, %p173
    %p176 = scmp.ne.s32.totalorder %s159, %s175
    %p177 = scmp.eq.s32.totalorder %s21, 0
    %p178 = por %p176, %p177
    %s180 = sadd.s32 %s179, 1
    %p183 = scmp.eq.s32.totalorder %s15, 1
    %p184 = scmp.ne.s32.totalorder %s179, %s181
    %p185 = scmp.eq.s32.totalorder %s15, 0
    %p186 = por %p184, %p185
    %p187 = scmp.ne.s32.totalorder %s179, %s181
    %p188 = scmp.eq.s32.totalorder %s20, 1
    %p189 = por %p187, %p188
    %p190 = scmp.ne.s32.totalorder %s181, %s182
    %p191 = scmp.eq.s32.totalorder %s20, 0
    %p192 = por %p190, %p191
    %p193 = scmp.ne.s32.totalorder %s181, %s182
    %p194 = scmp.eq.s32.totalorder %s21, 1
    %p195 = por %p193, %p194
    %p197 = scmp.ne.s32.totalorder %s182, %s196
    %p198 = scmp.eq.s32.totalorder %s21, 0
    %p199 = por %p197, %p198
    %s200 = ssub.s32 %s15, %s22
    %p201 = scmp.eq.s32.totalorder %s200, 0
    %s203 = sadd.s32 %s202, 1
    %s204 = scalar_select %p201, %s202, %s203
    %p207 = pneg %p201
    %p208 = scmp.eq.s32.totalorder %s15, 1
    %p209 = por %p207, %p208
    %p210 = scmp.ne.s32.totalorder %s202, %s205
    %p211 = scmp.eq.s32.totalorder %s15, 0
    %p212 = por %p210, %p211
    %p213 = scmp.ne.s32.totalorder %s202, %s205
    %p214 = scmp.eq.s32.totalorder %s20, 1
    %p215 = por %p213, %p214
    %p216 = scmp.ne.s32.totalorder %s205, %s206
    %p217 = scmp.eq.s32.totalorder %s20, 0
    %p218 = por %p216, %p217
    %p219 = scmp.ne.s32.totalorder %s205, %s206
    %p220 = scmp.eq.s32.totalorder %s21, 1
    %p221 = por %p219, %p220
    %p223 = scmp.ne.s32.totalorder %s206, %s222
    %p224 = scmp.eq.s32.totalorder %s21, 0
    %p225 = por %p223, %p224
    %s226 = ssub.s32 %s15, %s22
    %p227 = scmp.eq.s32.totalorder %s226, 0
    %s229 = sadd.s32 %s228, 1
    %s230 = scalar_select %p227, %s228, %s229
    %p233 = pneg %p227
    %p234 = scmp.eq.s32.totalorder %s15, 1
    %p235 = por %p233, %p234
    %p236 = scmp.ne.s32.totalorder %s228, %s231
    %p237 = scmp.eq.s32.totalorder %s15, 0
    %p238 = por %p236, %p237
    %p239 = scmp.ne.s32.totalorder %s228, %s231
    %p240 = scmp.eq.s32.totalorder %s20, 1
    %p241 = por %p239, %p240
    %p242 = scmp.ne.s32.totalorder %s231, %s232
    %p243 = scmp.eq.s32.totalorder %s20, 0
    %p244 = por %p242, %p243
    %p245 = scmp.ne.s32.totalorder %s231, %s232
    %p246 = scmp.eq.s32.totalorder %s21, 1
    %p247 = por %p245, %p246
    %p249 = scmp.ne.s32.totalorder %s232, %s248
    %p250 = scmp.eq.s32.totalorder %s21, 0
    %p251 = por %p249, %p250
    %p252 = scmp.le.s32.totalorder 1, %s15
    %p253 = scmp.lt.s32.totalorder %s15, 3
    %p254 = pnand %p252, %p253
    %p255 = pneg %p254
    // Predicated region
    $region9: #{downsample_pallas.2} parent=5 // pred_check
      _
    $region10: #{downsample_pallas.2} parent=5 // pred_check_branch
      %257 = sbr.rel (%p254) target = $region12
    $region11: #{downsample_pallas.2} parent=5 // pred_region
      %s258 = ssub.s32 %s15, 1
      // Predicated region
      $region13: #{downsample_pallas.2} parent=11 // pred_check
        %p259 = pneg %p192
      $region14: #{downsample_pallas.2} parent=11 // pred_check_branch
        %261 = sbr.rel (%p259) target = $region16
      $region15: #{downsample_pallas.2} parent=11 // pred_region
        _
      $region16: #{downsample_pallas.2} parent=11 // pred_fallthru
        _
    $region12: #{downsample_pallas.2} parent=5 // pred_fallthru
      _
    %p262 = scmp.lt.s32.totalorder %s15, 2
    // Predicated region
    $region17: #{downsample_pallas.2} parent=5 // pred_check
      %p263 = pneg %p262
    $region18: #{downsample_pallas.2} parent=5 // pred_check_branch
      %265 = sbr.rel (%p263) target = $region20
    $region19: #{downsample_pallas.2} parent=5 // pred_region
      // Predicated region
      $region21: #{downsample_pallas.2} parent=19 // pred_check
        %p266 = pneg %p35
      $region22: #{downsample_pallas.2} parent=19 // pred_check_branch
        %268 = sbr.rel (%p266) target = $region24
      $region23: #{downsample_pallas.2} parent=19 // pred_region
        %p269 = scmp.lt.s32.totalorder %s15, 1
        %s270 = scalar_select %p269, %s15, 1
        %s271 = smul.addr %s270, 16
        %s272 = smul.addr %s271, 8
        %s273 = scalar_lea.vmem %s0, %s272
      $region24: #{downsample_pallas.2} parent=19 // pred_fallthru
        _
      // Predicated region
      $region25: #{downsample_pallas.2} parent=19 // pred_check
        %p274 = pneg %p61
      $region26: #{downsample_pallas.2} parent=19 // pred_check_branch
        %276 = sbr.rel (%p274) target = $region28
      $region27: #{downsample_pallas.2} parent=19 // pred_region
        %p277 = scmp.lt.s32.totalorder %s15, 1
        %s278 = scalar_select %p277, %s15, 1
        %s279 = smul.addr %s278, 2
        %s280 = smul.addr %s279, 8
        %s281 = scalar_lea.vmem %s1, %s280
      $region28: #{downsample_pallas.2} parent=19 // pred_fallthru
        _
      // Predicated region
      $region29: #{downsample_pallas.2} parent=19 // pred_check
        %p282 = pneg %p87
      $region30: #{downsample_pallas.2} parent=19 // pred_check_branch
        %284 = sbr.rel (%p282) target = $region32
      $region31: #{downsample_pallas.2} parent=19 // pred_region
        %p285 = scmp.lt.s32.totalorder %s15, 1
        %s286 = scalar_select %p285, %s15, 1
        %s287 = smul.addr %s286, 8
        %s288 = smul.addr %s287, 8
        %s289 = scalar_lea.vmem %s2, %s288
      $region32: #{downsample_pallas.2} parent=19 // pred_fallthru
        _
      // Predicated region
      $region33: #{downsample_pallas.2} parent=19 // pred_check
        %p290 = pneg %p113
      $region34: #{downsample_pallas.2} parent=19 // pred_check_branch
        %292 = sbr.rel (%p290) target = $region36
      $region35: #{downsample_pallas.2} parent=19 // pred_region
        %p293 = scmp.lt.s32.totalorder %s15, 1
        %s294 = scalar_select %p293, %s15, 1
        %s295 = smul.addr %s294, 8
        %s296 = scalar_lea.vmem %s3, %s295
      $region36: #{downsample_pallas.2} parent=19 // pred_fallthru
        _
      // Predicated region
      $region37: #{downsample_pallas.2} parent=19 // pred_check
        %p297 = pneg %p139
      $region38: #{downsample_pallas.2} parent=19 // pred_check_branch
        %299 = sbr.rel (%p297) target = $region40
      $region39: #{downsample_pallas.2} parent=19 // pred_region
        %p300 = scmp.lt.s32.totalorder %s15, 1
        %s301 = scalar_select %p300, %s15, 1
        %s302 = smul.addr %s301, 16
        %s303 = smul.addr %s302, 8
        %s304 = scalar_lea.vmem %s4, %s303
      $region40: #{downsample_pallas.2} parent=19 // pred_fallthru
        _
      // Predicated region
      $region41: #{downsample_pallas.2} parent=19 // pred_check
        %p305 = pneg %p165
      $region42: #{downsample_pallas.2} parent=19 // pred_check_branch
        %307 = sbr.rel (%p305) target = $region44
      $region43: #{downsample_pallas.2} parent=19 // pred_region
        %p308 = scmp.lt.s32.totalorder %s15, 1
        %s309 = scalar_select %p308, %s15, 1
        %s310 = smul.addr %s309, 8
        %s311 = smul.addr %s310, 8
        %s312 = scalar_lea.vmem %s5, %s311
      $region44: #{downsample_pallas.2} parent=19 // pred_fallthru
        _
    $region20: #{downsample_pallas.2} parent=5 // pred_fallthru
      _
    %p313 = scmp.le.s32.totalorder 1, %s15
    %p314 = scmp.lt.s32.totalorder %s15, 3
    %p315 = pnand %p313, %p314
    %p316 = pneg %p315
    // Predicated region
    $region45: #{downsample_pallas.2} parent=5 // pred_check
      _
    $region46: #{downsample_pallas.2} parent=5 // pred_check_branch
      %318 = sbr.rel (%p315) target = $region48
    $region47: #{downsample_pallas.2} parent=5 // pred_region
      %s319 = ssub.s32 %s15, 1
      %p320 = scmp.lt.s32.totalorder %s20, 1
      %s321 = scalar_select %p320, %s20, 1
      %s322 = smul.addr %s321, 16
      %s323 = smul.addr %s322, 8
      %s324 = scalar_lea.vmem %s0, %s323
      %p325 = pneg %p41
      %p326 = pneg %p38
      %p327 = scmp.lt.s32.totalorder %s20, 1
      %s328 = scalar_select %p327, %s20, 1
      %s329 = smul.addr %s328, 2
      %s330 = smul.addr %s329, 8
      %s331 = scalar_lea.vmem %s1, %s330
      %p332 = pneg %p67
      %p333 = pneg %p64
      %p334 = scmp.lt.s32.totalorder %s20, 1
      %s335 = scalar_select %p334, %s20, 1
      %s336 = smul.addr %s335, 8
      %s337 = smul.addr %s336, 8
      %s338 = scalar_lea.vmem %s2, %s337
      %p339 = pneg %p93
      %p340 = pneg %p90
      %p341 = scmp.lt.s32.totalorder %s20, 1
      %s342 = scalar_select %p341, %s20, 1
      %s343 = smul.addr %s342, 8
      %s344 = scalar_lea.vmem %s3, %s343
      %p345 = pneg %p119
      %p346 = pneg %p116
      %p347 = scmp.lt.s32.totalorder %s20, 1
      %s348 = scalar_select %p347, %s20, 1
      %s349 = smul.addr %s348, 16
      %s350 = smul.addr %s349, 8
      %s351 = scalar_lea.vmem %s4, %s350
      %p352 = pneg %p145
      %p353 = pneg %p142
      %p354 = scmp.lt.s32.totalorder %s20, 1
      %s355 = scalar_select %p354, %s20, 1
      %s356 = smul.addr %s355, 8
      %s357 = smul.addr %s356, 8
      %s358 = scalar_lea.vmem %s5, %s357
      %p359 = pneg %p171
      %p360 = pneg %p168
      %p361 = pneg %p192
      %p362 = pneg %p189
      %p363 = pneg %p218
      %p364 = pneg %p215
      %p365 = scmp.lt.s32.totalorder %s20, 1
      %s366 = scalar_select %p365, %s20, 1
      %s367 = smul.addr %s366, 8
      %s368 = smul.addr %s367, 8
      %s369 = scalar_lea.vmem %s7, %s368
      %p370 = pneg %p244
      %p371 = pneg %p241
      %p372 = scmp.lt.s32.totalorder %s20, 1
      %s373 = scalar_select %p372, %s20, 1
      %s374 = smul.addr %s373, 8
      %s375 = scalar_lea.vmem %s8, %s374
      %p376 = scmp.lt.s32.totalorder %s20, 1
      %s377 = scalar_select %p376, %s20, 1
      %s378 = smul.addr %s377, 16
      %s379 = smul.addr %s378, 8
      %s380 = scalar_lea.vmem %s0, %s379
      %p381 = scmp.lt.s32.totalorder %s20, 1
      %s382 = scalar_select %p381, %s20, 1
      %s383 = smul.addr %s382, 2
      %s384 = smul.addr %s383, 8
      %s385 = scalar_lea.vmem %s1, %s384
      %p386 = scmp.lt.s32.totalorder %s20, 1
      %s387 = scalar_select %p386, %s20, 1
      %s388 = smul.addr %s387, 8
      %s389 = smul.addr %s388, 8
      %s390 = scalar_lea.vmem %s2, %s389
      %p391 = scmp.lt.s32.totalorder %s20, 1
      %s392 = scalar_select %p391, %s20, 1
      %s393 = smul.addr %s392, 8
      %s394 = scalar_lea.vmem %s3, %s393
      %p395 = scmp.lt.s32.totalorder %s20, 1
      %s396 = scalar_select %p395, %s20, 1
      %s397 = smul.addr %s396, 16
      %s398 = smul.addr %s397, 8
      %s399 = scalar_lea.vmem %s4, %s398
      %p400 = scmp.lt.s32.totalorder %s20, 1
      %s401 = scalar_select %p400, %s20, 1
      %s402 = smul.addr %s401, 8
      %s403 = smul.addr %s402, 8
      %s404 = scalar_lea.vmem %s5, %s403
      %p405 = scmp.lt.s32.totalorder %s20, 1
      %s406 = scalar_select %p405, %s20, 1
      %s407 = smul.addr %s406, 8
      %s408 = smul.addr %s407, 8
      %s409 = scalar_lea.vmem %s7, %s408
      %p410 = scmp.lt.s32.totalorder %s20, 1
      %s411 = scalar_select %p410, %s20, 1
      %s412 = smul.addr %s411, 8
      %s413 = scalar_lea.vmem %s8, %s412
      %v414 = vld [vmem:[%s380] sm:$0xff]
      %v415 = vld [vmem:[%s380 + $0x8] sm:$0x1]
      %v416 = vld [vmem:[%s380 + $0x10] sm:$0xff]
      %v417 = vld [vmem:[%s380 + $0x18] sm:$0x1]
      %v418 = vld [vmem:[%s380 + $0x20] sm:$0xff]
      %v419 = vld [vmem:[%s380 + $0x28] sm:$0x1]
      %v420 = vld [vmem:[%s380 + $0x30] sm:$0xff]
      %v421 = vld [vmem:[%s380 + $0x38] sm:$0x1]
      %v422 = vld [vmem:[%s380 + $0x40] sm:$0xff]
      %v423 = vld [vmem:[%s380 + $0x48] sm:$0x1]
      %v424 = vld [vmem:[%s380 + $0x50] sm:$0xff]
      %v425 = vld [vmem:[%s380 + $0x58] sm:$0x1]
      %v426 = vld [vmem:[%s380 + $0x60] sm:$0xff]
      %v427 = vld [vmem:[%s380 + $0x68] sm:$0x1]
      %v428 = vld [vmem:[%s380 + $0x70] sm:$0xff]
      %v429 = vld [vmem:[%s380 + $0x78] sm:$0x1]
      %v430 = vld [vmem:[%s390] sm:$0xff]
      %v431 = vld [vmem:[%s390 + $0x8] sm:$0xff]
      %v432 = vld [vmem:[%s390 + $0x10] sm:$0xff]
      %v433 = vld [vmem:[%s390 + $0x18] sm:$0xff]
      %v434 = vld [vmem:[%s390 + $0x20] sm:$0xff]
      %v435 = vld [vmem:[%s390 + $0x28] sm:$0xff]
      %v436 = vld [vmem:[%s390 + $0x30] sm:$0xff]
      %v437 = vld [vmem:[%s390 + $0x38] sm:$0xff]
      %v438 = vld [vmem:[%s399] sm:$0xff]
      %v439 = vld [vmem:[%s399 + $0x8] sm:$0x1]
      %v440 = vld [vmem:[%s399 + $0x10] sm:$0xff]
      %v441 = vld [vmem:[%s399 + $0x18] sm:$0x1]
      %v442 = vld [vmem:[%s399 + $0x20] sm:$0xff]
      %v443 = vld [vmem:[%s399 + $0x28] sm:$0x1]
      %v444 = vld [vmem:[%s399 + $0x30] sm:$0xff]
      %v445 = vld [vmem:[%s399 + $0x38] sm:$0x1]
      %v446 = vld [vmem:[%s399 + $0x40] sm:$0xff]
      %v447 = vld [vmem:[%s399 + $0x48] sm:$0x1]
      %v448 = vld [vmem:[%s399 + $0x50] sm:$0xff]
      %v449 = vld [vmem:[%s399 + $0x58] sm:$0x1]
      %v450 = vld [vmem:[%s399 + $0x60] sm:$0xff]
      %v451 = vld [vmem:[%s399 + $0x68] sm:$0x1]
      %v452 = vld [vmem:[%s399 + $0x70] sm:$0xff]
      %v453 = vld [vmem:[%s399 + $0x78] sm:$0x1]
      %v454 = vld [vmem:[%s404] sm:$0xff]
      %v455 = vld [vmem:[%s404 + $0x8] sm:$0xff]
      %v456 = vld [vmem:[%s404 + $0x10] sm:$0xff]
      %v457 = vld [vmem:[%s404 + $0x18] sm:$0xff]
      %v458 = vld [vmem:[%s404 + $0x20] sm:$0xff]
      %v459 = vld [vmem:[%s404 + $0x28] sm:$0xff]
      %v460 = vld [vmem:[%s404 + $0x30] sm:$0xff]
      %v461 = vld [vmem:[%s404 + $0x38] sm:$0xff]
      %v462 = vld [vmem:[%s385] sm:$0xff]
      %v463 = vld [vmem:[%s385 + $0x8] sm:$0x1]
      %v464 = vld [vmem:[%s394] sm:$0xff]
      %vm481 = vcmask 1046528
      %v482 = vrot.slane %v414, 1
      %v483 = vrot.slane %v415, 1
      %v484 = vsel %vm481, %v482, %v483
      %v485 = vrot.slane %v416, 1
      %v486 = vrot.slane %v417, 1
      %v487 = vsel %vm481, %v485, %v486
      %v488 = vrot.slane %v418, 1
      %v489 = vrot.slane %v419, 1
      %v490 = vsel %vm481, %v488, %v489
      %v491 = vrot.slane %v420, 1
      %v492 = vrot.slane %v421, 1
      %v493 = vsel %vm481, %v491, %v492
      %v494 = vrot.slane %v422, 1
      %v495 = vrot.slane %v423, 1
      %v496 = vsel %vm481, %v494, %v495
      %v497 = vrot.slane %v424, 1
      %v498 = vrot.slane %v425, 1
      %v499 = vsel %vm481, %v497, %v498
      %v500 = vrot.slane %v426, 1
      %v501 = vrot.slane %v427, 1
      %v502 = vsel %vm481, %v500, %v501
      %v503 = vrot.slane %v428, 1
      %v504 = vrot.slane %v429, 1
      %v505 = vsel %vm481, %v503, %v504
      %v522 = vrot.slane %v438, 1
      %v523 = vrot.slane %v439, 1
      %v524 = vsel %vm481, %v522, %v523
      %v525 = vrot.slane %v440, 1
      %v526 = vrot.slane %v441, 1
      %v527 = vsel %vm481, %v525, %v526
      %v528 = vrot.slane %v442, 1
      %v529 = vrot.slane %v443, 1
      %v530 = vsel %vm481, %v528, %v529
      %v531 = vrot.slane %v444, 1
      %v532 = vrot.slane %v445, 1
      %v533 = vsel %vm481, %v531, %v532
      %v534 = vrot.slane %v446, 1
      %v535 = vrot.slane %v447, 1
      %v536 = vsel %vm481, %v534, %v535
      %v537 = vrot.slane %v448, 1
      %v538 = vrot.slane %v449, 1
      %v539 = vsel %vm481, %v537, %v538
      %v540 = vrot.slane %v450, 1
      %v541 = vrot.slane %v451, 1
      %v542 = vsel %vm481, %v540, %v541
      %v543 = vrot.slane %v452, 1
      %v544 = vrot.slane %v453, 1
      %v545 = vsel %vm481, %v543, %v544
      %v548 = vrot.slane %v462, 1
      %v549 = vrot.slane %v463, 1
      %v550 = vsel %vm481, %v548, %v549
      %559 = vrot.lane.b32.xlu0 %v430, 4
      %v560 = vpop.permute.xlu0 %559
      %561 = vrot.lane.b32.xlu0 %v431, 4
      %v562 = vpop.permute.xlu0 %561
      %563 = vrot.lane.b32.xlu0 %v432, 4
      %v564 = vpop.permute.xlu0 %563
      %565 = vrot.lane.b32.xlu0 %v433, 4
      %v566 = vpop.permute.xlu0 %565
      %567 = vrot.lane.b32.xlu0 %v434, 4
      %v568 = vpop.permute.xlu0 %567
      %569 = vrot.lane.b32.xlu0 %v435, 4
      %v570 = vpop.permute.xlu0 %569
      %571 = vrot.lane.b32.xlu0 %v436, 4
      %v572 = vpop.permute.xlu0 %571
      %573 = vrot.lane.b32.xlu0 %v437, 4
      %v574 = vpop.permute.xlu0 %573
      %583 = vrot.lane.b32.xlu0 %v484, 8
      %v584 = vpop.permute.xlu0 %583
      %585 = vrot.lane.b32.xlu0 %v487, 8
      %v586 = vpop.permute.xlu0 %585
      %587 = vrot.lane.b32.xlu0 %v490, 8
      %v588 = vpop.permute.xlu0 %587
      %589 = vrot.lane.b32.xlu0 %v493, 8
      %v590 = vpop.permute.xlu0 %589
      %591 = vrot.lane.b32.xlu0 %v496, 8
      %v592 = vpop.permute.xlu0 %591
      %593 = vrot.lane.b32.xlu0 %v499, 8
      %v594 = vpop.permute.xlu0 %593
      %595 = vrot.lane.b32.xlu0 %v502, 8
      %v596 = vpop.permute.xlu0 %595
      %597 = vrot.lane.b32.xlu0 %v505, 8
      %v598 = vpop.permute.xlu0 %597
      %607 = vrot.lane.b32.xlu0 %v438, 12
      %v608 = vpop.permute.xlu0 %607
      %609 = vrot.lane.b32.xlu0 %v440, 12
      %v610 = vpop.permute.xlu0 %609
      %611 = vrot.lane.b32.xlu0 %v442, 12
      %v612 = vpop.permute.xlu0 %611
      %613 = vrot.lane.b32.xlu0 %v444, 12
      %v614 = vpop.permute.xlu0 %613
      %615 = vrot.lane.b32.xlu0 %v446, 12
      %v616 = vpop.permute.xlu0 %615
      %617 = vrot.lane.b32.xlu0 %v448, 12
      %v618 = vpop.permute.xlu0 %617
      %619 = vrot.lane.b32.xlu0 %v450, 12
      %v620 = vpop.permute.xlu0 %619
      %621 = vrot.lane.b32.xlu0 %v452, 12
      %v622 = vpop.permute.xlu0 %621
      %639 = vrot.lane.b32.xlu0 %v454, 16
      %v640 = vpop.permute.xlu0 %639
      %641 = vrot.lane.b32.xlu0 %v455, 16
      %v642 = vpop.permute.xlu0 %641
      %643 = vrot.lane.b32.xlu0 %v456, 16
      %v644 = vpop.permute.xlu0 %643
      %645 = vrot.lane.b32.xlu0 %v457, 16
      %v646 = vpop.permute.xlu0 %645
      %647 = vrot.lane.b32.xlu0 %v458, 16
      %v648 = vpop.permute.xlu0 %647
      %649 = vrot.lane.b32.xlu0 %v459, 16
      %v650 = vpop.permute.xlu0 %649
      %651 = vrot.lane.b32.xlu0 %v460, 16
      %v652 = vpop.permute.xlu0 %651
      %653 = vrot.lane.b32.xlu0 %v461, 16
      %v654 = vpop.permute.xlu0 %653
      %663 = vrot.lane.b32.xlu0 %v524, 20
      %v664 = vpop.permute.xlu0 %663
      %665 = vrot.lane.b32.xlu0 %v527, 20
      %v666 = vpop.permute.xlu0 %665
      %667 = vrot.lane.b32.xlu0 %v530, 20
      %v668 = vpop.permute.xlu0 %667
      %669 = vrot.lane.b32.xlu0 %v533, 20
      %v670 = vpop.permute.xlu0 %669
      %671 = vrot.lane.b32.xlu0 %v536, 20
      %v672 = vpop.permute.xlu0 %671
      %673 = vrot.lane.b32.xlu0 %v539, 20
      %v674 = vpop.permute.xlu0 %673
      %675 = vrot.lane.b32.xlu0 %v542, 20
      %v676 = vpop.permute.xlu0 %675
      %677 = vrot.lane.b32.xlu0 %v545, 20
      %v678 = vpop.permute.xlu0 %677
      %687 = vrot.lane.b32.xlu0 %v416, 24
      %v688 = vpop.permute.xlu0 %687
      %689 = vrot.lane.b32.xlu0 %v418, 24
      %v690 = vpop.permute.xlu0 %689
      %691 = vrot.lane.b32.xlu0 %v420, 24
      %v692 = vpop.permute.xlu0 %691
      %693 = vrot.lane.b32.xlu0 %v422, 24
      %v694 = vpop.permute.xlu0 %693
      %695 = vrot.lane.b32.xlu0 %v424, 24
      %v696 = vpop.permute.xlu0 %695
      %697 = vrot.lane.b32.xlu0 %v426, 24
      %v698 = vpop.permute.xlu0 %697
      %699 = vrot.lane.b32.xlu0 %v428, 24
      %v700 = vpop.permute.xlu0 %699
      %701 = vrot.lane.b32.xlu0 %v462, 24
      %v702 = vpop.permute.xlu0 %701
      %712 = vrot.lane.b32.xlu0 %v431, 28
      %v713 = vpop.permute.xlu0 %712
      %714 = vrot.lane.b32.xlu0 %v432, 28
      %v715 = vpop.permute.xlu0 %714
      %716 = vrot.lane.b32.xlu0 %v433, 28
      %v717 = vpop.permute.xlu0 %716
      %718 = vrot.lane.b32.xlu0 %v434, 28
      %v719 = vpop.permute.xlu0 %718
      %720 = vrot.lane.b32.xlu0 %v435, 28
      %v721 = vpop.permute.xlu0 %720
      %722 = vrot.lane.b32.xlu0 %v436, 28
      %v723 = vpop.permute.xlu0 %722
      %724 = vrot.lane.b32.xlu0 %v437, 28
      %v725 = vpop.permute.xlu0 %724
      %726 = vrot.lane.b32.xlu0 %v464, 28
      %v727 = vpop.permute.xlu0 %726
      %736 = vrot.lane.b32.xlu0 %v487, 32
      %v737 = vpop.permute.xlu0 %736
      %738 = vrot.lane.b32.xlu0 %v490, 32
      %v739 = vpop.permute.xlu0 %738
      %740 = vrot.lane.b32.xlu0 %v493, 32
      %v741 = vpop.permute.xlu0 %740
      %742 = vrot.lane.b32.xlu0 %v496, 32
      %v743 = vpop.permute.xlu0 %742
      %744 = vrot.lane.b32.xlu0 %v499, 32
      %v745 = vpop.permute.xlu0 %744
      %746 = vrot.lane.b32.xlu0 %v502, 32
      %v747 = vpop.permute.xlu0 %746
      %748 = vrot.lane.b32.xlu0 %v505, 32
      %v749 = vpop.permute.xlu0 %748
      %750 = vrot.lane.b32.xlu0 %v550, 32
      %v751 = vpop.permute.xlu0 %750
      %vm760 = vcmask 31744
      %v761 = vsel %vm760, %v414, %v560
      %v762 = vsel %vm760, %v416, %v562
      %v763 = vsel %vm760, %v418, %v564
      %v764 = vsel %vm760, %v420, %v566
      %v765 = vsel %vm760, %v422, %v568
      %v766 = vsel %vm760, %v424, %v570
      %v767 = vsel %vm760, %v426, %v572
      %v768 = vsel %vm760, %v428, %v574
      %vm769 = vcmask 64512
      %v770 = vsel %vm769, %v761, %v584
      %v771 = vsel %vm769, %v762, %v586
      %v772 = vsel %vm769, %v763, %v588
      %v773 = vsel %vm769, %v764, %v590
      %v774 = vsel %vm769, %v765, %v592
      %v775 = vsel %vm769, %v766, %v594
      %v776 = vsel %vm769, %v767, %v596
      %v777 = vsel %vm769, %v768, %v598
      %vm778 = vcmask 97280
      %v779 = vsel %vm778, %v770, %v608
      %v780 = vsel %vm778, %v771, %v610
      %v781 = vsel %vm778, %v772, %v612
      %v782 = vsel %vm778, %v773, %v614
      %v783 = vsel %vm778, %v774, %v616
      %v784 = vsel %vm778, %v775, %v618
      %v785 = vsel %vm778, %v776, %v620
      %v786 = vsel %vm778, %v777, %v622
      %vm787 = vcmask 130048
      %v788 = vsel %vm787, %v779, %v640
      %v789 = vsel %vm787, %v780, %v642
      %v790 = vsel %vm787, %v781, %v644
      %v791 = vsel %vm787, %v782, %v646
      %v792 = vsel %vm787, %v783, %v648
      %v793 = vsel %vm787, %v784, %v650
      %v794 = vsel %vm787, %v785, %v652
      %v795 = vsel %vm787, %v786, %v654
      %vm796 = vcmask 162816
      %v797 = vsel %vm796, %v788, %v664
      %v798 = vsel %vm796, %v789, %v666
      %v799 = vsel %vm796, %v790, %v668
      %v800 = vsel %vm796, %v791, %v670
      %v801 = vsel %vm796, %v792, %v672
      %v802 = vsel %vm796, %v793, %v674
      %v803 = vsel %vm796, %v794, %v676
      %v804 = vsel %vm796, %v795, %v678
      %vm805 = vcmask 195584
      %v806 = vsel %vm805, %v797, %v688
      %v807 = vsel %vm805, %v798, %v690
      %v808 = vsel %vm805, %v799, %v692
      %v809 = vsel %vm805, %v800, %v694
      %v810 = vsel %vm805, %v801, %v696
      %v811 = vsel %vm805, %v802, %v698
      %v812 = vsel %vm805, %v803, %v700
      %v813 = vsel %vm805, %v804, %v702
      %vm814 = vcmask 228352
      %v815 = vsel %vm814, %v806, %v713
      %v816 = vsel %vm814, %v807, %v715
      %v817 = vsel %vm814, %v808, %v717
      %v818 = vsel %vm814, %v809, %v719
      %v819 = vsel %vm814, %v810, %v721
      %v820 = vsel %vm814, %v811, %v723
      %v821 = vsel %vm814, %v812, %v725
      %v822 = vsel %vm814, %v813, %v727
      %vm823 = vcmask 261120
      %v824 = vsel %vm823, %v815, %v737
      %v825 = vsel %vm823, %v816, %v739
      %v826 = vsel %vm823, %v817, %v741
      %v827 = vsel %vm823, %v818, %v743
      %v828 = vsel %vm823, %v819, %v745
      %v829 = vsel %vm823, %v820, %v747
      %v830 = vsel %vm823, %v821, %v749
      %v831 = vsel %vm823, %v822, %v751
      %v832 = vld [vmem:[%s6] sm:$0xff]
      %v833 = vld [vmem:[%s6 + $0x8] sm:$0xff]
      %v834 = vld [vmem:[%s6 + $0x10] sm:$0xff]
      %v835 = vld [vmem:[%s6 + $0x18] sm:$0xff]
      %v836 = vld [vmem:[%s6 + $0x20] sm:$0xf]
      %vm837 = vcmask 293888
      %v839 = vsel %vm837, %v824, 0
      %v842 = vsel %vm837, %v825, 0
      %v845 = vsel %vm837, %v826, 0
      %v848 = vsel %vm837, %v827, 0
      %v851 = vsel %vm837, %v828, 0
      %v854 = vsel %vm837, %v829, 0
      %v857 = vsel %vm837, %v830, 0
      %v860 = vsel %vm837, %v831, 0
      %vm862 = vcmask 1043456
      %v864 = vsel %vm862, %v836, 0
      %866 = vmatpush.msra.mxu0 0.0
      %867 = vmatpush.msra.mxu0 0.0
      %868 = vmatpush.msra.mxu0 0.0
      %869 = vmatpush.msra.mxu0 0.0
      %870 = vmatpush.msra.mxu0 0.0
      %871 = vmatpush.msra.mxu0 0.0
      %872 = vmatpush.msra.mxu0 0.0
      %873 = vmatpush.msra.mxu0 0.0
      %874 = vmatpush.msra.mxu0 0.0
      %875 = vmatpush.msra.mxu0 0.0
      %876 = vmatpush.msra.mxu0 0.0
      %877 = vmatpush.msra.mxu0 %v864
      %878 = vmatpush.msra.mxu0 %v835
      %879 = vmatpush.msra.mxu0 %v834
      %880 = vmatpush.msra.mxu0 %v833
      %881 = vmatpush.msra.mxu0 %v832
      %882 = vmatmul.f32.gmra.mxu0 %v839
      %v883 = vpop.f32.mrf.mxu0
      %v884 = vadd.f32 0.0, %v883
      %885 = vmatmul.f32.gmra.mxu0 %v842
      %v886 = vpop.f32.mrf.mxu0
      %v887 = vadd.f32 0.0, %v886
      %888 = vmatmul.f32.gmra.mxu0 %v845
      %v889 = vpop.f32.mrf.mxu0
      %v890 = vadd.f32 0.0, %v889
      %891 = vmatmul.f32.gmra.mxu0 %v848
      %v892 = vpop.f32.mrf.mxu0
      %v893 = vadd.f32 0.0, %v892
      %894 = vmatmul.f32.gmra.mxu0 %v851
      %v895 = vpop.f32.mrf.mxu0
      %v896 = vadd.f32 0.0, %v895
      %897 = vmatmul.f32.gmra.mxu0 %v854
      %v898 = vpop.f32.mrf.mxu0
      %v899 = vadd.f32 0.0, %v898
      %900 = vmatmul.f32.gmra.mxu0 %v857
      %v901 = vpop.f32.mrf.mxu0
      %v902 = vadd.f32 0.0, %v901
      %903 = vmatmul.f32.gmra.mxu0 %v860
      %v904 = vpop.f32.mrf.mxu0
      %v905 = vadd.f32 0.0, %v904
      %906 = vdwg.mxu0
      %907 = vst [vmem:[%s409] sm:$0xff] %v884
      %908 = vst [vmem:[%s409 + $0x8] sm:$0xff] %v887
      %909 = vst [vmem:[%s409 + $0x10] sm:$0xff] %v890
      %910 = vst [vmem:[%s409 + $0x18] sm:$0xff] %v893
      %911 = vst [vmem:[%s409 + $0x20] sm:$0xff] %v896
      %912 = vst [vmem:[%s409 + $0x28] sm:$0xff] %v899
      %913 = vst [vmem:[%s409 + $0x30] sm:$0xff] %v902
      %914 = vst [vmem:[%s409 + $0x38] sm:$0xff] %v905
      %v915 = vadd.f32 %v884, %v887
      %v916 = vadd.f32 %v915, %v890
      %v917 = vadd.f32 %v916, %v893
      %v918 = vadd.f32 %v917, %v896
      %v919 = vadd.f32 %v918, %v899
      %v920 = vadd.f32 %v919, %v902
      %v921 = vadd.f32 %v920, %v905
      %v922 = vrot.slane %v921, 4
      %v923 = vadd.f32 %v921, %v922
      %v924 = vrot.slane %v923, 2
      %v925 = vadd.f32 %v923, %v924
      %v926 = vrot.slane %v925, 1
      %v927 = vadd.f32 %v925, %v926
      %v928 = vmul.f32 %v884, %v884
      %v929 = vmul.f32 %v887, %v887
      %v930 = vmul.f32 %v890, %v890
      %v931 = vmul.f32 %v893, %v893
      %v932 = vmul.f32 %v896, %v896
      %v933 = vmul.f32 %v899, %v899
      %v934 = vmul.f32 %v902, %v902
      %v935 = vmul.f32 %v905, %v905
      %v936 = vadd.f32 %v928, %v929
      %v937 = vadd.f32 %v936, %v930
      %v938 = vadd.f32 %v937, %v931
      %v939 = vadd.f32 %v938, %v932
      %v940 = vadd.f32 %v939, %v933
      %v941 = vadd.f32 %v940, %v934
      %v942 = vadd.f32 %v941, %v935
      %v943 = vrot.slane %v942, 4
      %v944 = vadd.f32 %v942, %v943
      %v945 = vrot.slane %v944, 2
      %v946 = vadd.f32 %v944, %v945
      %v947 = vrot.slane %v946, 1
      %v948 = vadd.f32 %v946, %v947
      %vm949 = vcmask 1040384
      %v950 = vsel %vm949, %v927, %v948
      %vm951 = vcmask 1041408
      %v952 = vsel %vm951, %v950, 0.0
      %953 = vst [vmem:[%s413] sm:$0xff] %v952
      %p954 = scmp.lt.s32.totalorder %s20, 1
      %s955 = scalar_select %p954, %s20, 1
      %s956 = smul.addr %s955, 8
      %s957 = smul.addr %s956, 8
      %s958 = scalar_lea.vmem %s7, %s957
      %p959 = scmp.lt.s32.totalorder %s20, 1
      %s960 = scalar_select %p959, %s20, 1
      %s961 = smul.addr %s960, 8
      %s962 = scalar_lea.vmem %s8, %s961
      // Predicated region
      $region49: #{downsample_pallas.2} parent=47 // pred_check
        %p963 = pneg %p215
      $region50: #{downsample_pallas.2} parent=47 // pred_check_branch
        %965 = sbr.rel (%p963) target = $region52
      $region51: #{downsample_pallas.2} parent=47 // pred_region
        _
      $region52: #{downsample_pallas.2} parent=47 // pred_fallthru
        _
      // Predicated region
      $region53: #{downsample_pallas.2} parent=47 // pred_check
        %p966 = pneg %p241
      $region54: #{downsample_pallas.2} parent=47 // pred_check_branch
        %968 = sbr.rel (%p966) target = $region56
      $region55: #{downsample_pallas.2} parent=47 // pred_region
        _
      $region56: #{downsample_pallas.2} parent=47 // pred_fallthru
        _
    $region48: #{downsample_pallas.2} parent=5 // pred_fallthru
      _
    %p969 = scmp.le.s32.totalorder 2, %s15
    // Predicated region
    $region57: #{downsample_pallas.2} parent=5 // pred_check
      %p970 = pneg %p969
    $region58: #{downsample_pallas.2} parent=5 // pred_check_branch
      %972 = sbr.rel (%p970) target = $region60
    $region59: #{downsample_pallas.2} parent=5 // pred_region
      %s973 = ssub.s32 %s15, 2
      // Predicated region
      $region61: #{downsample_pallas.2} parent=59 // pred_check
        %p974 = pneg %p221
      $region62: #{downsample_pallas.2} parent=59 // pred_check_branch
        %976 = sbr.rel (%p974) target = $region64
      $region63: #{downsample_pallas.2} parent=59 // pred_region
        %p977 = scmp.lt.s32.totalorder %s21, 1
        %s978 = scalar_select %p977, %s21, 1
        %s979 = smul.addr %s978, 8
        %s980 = smul.addr %s979, 8
        %s981 = scalar_lea.vmem %s7, %s980
      $region64: #{downsample_pallas.2} parent=59 // pred_fallthru
        _
      // Predicated region
      $region65: #{downsample_pallas.2} parent=59 // pred_check
        %p982 = pneg %p247
      $region66: #{downsample_pallas.2} parent=59 // pred_check_branch
        %984 = sbr.rel (%p982) target = $region68
      $region67: #{downsample_pallas.2} parent=59 // pred_region
        %p985 = scmp.lt.s32.totalorder %s21, 1
        %s986 = scalar_select %p985, %s21, 1
        %s987 = smul.addr %s986, 8
        %s988 = scalar_lea.vmem %s8, %s987
      $region68: #{downsample_pallas.2} parent=59 // pred_fallthru
        _
    $region60: #{downsample_pallas.2} parent=5 // pred_fallthru
      _
  $region6: #{downsample_pallas.2} parent=0 // loop_footer
    %s19 = sadd.s32 1, %s15
  $region7: #{downsample_pallas.2} parent=0 // loop_footer_branch
    %14 = sbr.rel target = $region3
  $region8: #{downsample_pallas.2} parent=0 // loop_exit
    _

</llo_original>
